<compile_context>
chip_gen: v7x
topology: tpu7x:2x2x1
jax: 0.10.0
libtpu: 0.0.40
codegen_flags: <defaults>
</compile_context>

<pallas_src>
import functools

import jax
import jax.numpy as jnp
from jax.experimental import pallas as pl
from jax.experimental.pallas import tpu as pltpu

LN_EPS = 1e-5                      # nn.LayerNorm default used by module_cross.LayerNorm
MATMUL_DTYPE = jnp.bfloat16        # MXU operand dtype (f32 accumulation everywhere)
VMEM_LIMIT = 48 * 1024 * 1024      # headroom for double-buffered weight tiles (fits v7x 64MiB)


def _tile(dim, target, gran):
    """Largest tile <= target that divides dim and is a multiple of gran (else full dim)."""
    if dim <= target:
        return dim
    t = (target // gran) * gran
    while t >= gran:
        if dim % t == 0:
            return t
        t -= gran
    return dim


# --------------------------------------------------------------------------------------
# Kernel 1: LayerNorm + dense projection (used for the fused QKV projection)
# --------------------------------------------------------------------------------------
def _ln_dense_kernel(x_ref, g_ref, beta_ref, w_ref, b_ref, out_ref, h_ref):
    # x_ref: [TS, D] f32   w_ref: [D, TN] bf16   out_ref: [TS, TN] bf16   h_ref: [TS, D] bf16
    @pl.when(pl.program_id(2) == 0)
    def _():
        x = x_ref[...].astype(jnp.float32)
        mean = jnp.mean(x, axis=-1, keepdims=True)
        var = jnp.mean((x - mean) ** 2, axis=-1, keepdims=True)
        h = (x - mean) * jax.lax.rsqrt(var + LN_EPS)
        h = h * g_ref[...] + beta_ref[...]
        h_ref[...] = h.astype(h_ref.dtype)

    y = jnp.dot(h_ref[...], w_ref[...], preferred_element_type=jnp.float32)
    out_ref[...] = (y + b_ref[...]).astype(out_ref.dtype)


def ln_dense(x, gamma, beta, w, b):
    B, S, D = x.shape
    N = w.shape[1]
    TS = _tile(S, 256, 8)
    TN = _tile(N, 512, 128)
    return pl.pallas_call(
        _ln_dense_kernel,
        out_shape=jax.ShapeDtypeStruct((B, S, N), MATMUL_DTYPE),
        grid_spec=pltpu.PrefetchScalarGridSpec(
            num_scalar_prefetch=0,
            grid=(B, S // TS, N // TN),
            in_specs=[
                pl.BlockSpec((None, TS, D), lambda bi, si, ni: (bi, si, 0)),
                pl.BlockSpec((1, D), lambda bi, si, ni: (0, 0)),
                pl.BlockSpec((1, D), lambda bi, si, ni: (0, 0)),
                pl.BlockSpec((D, TN), lambda bi, si, ni: (0, ni)),
                pl.BlockSpec((1, TN), lambda bi, si, ni: (0, ni)),
            ],
            out_specs=pl.BlockSpec((None, TS, TN), lambda bi, si, ni: (bi, si, ni)),
            scratch_shapes=[pltpu.VMEM((TS, D), MATMUL_DTYPE)],
        ),
        compiler_params=pltpu.CompilerParams(
            dimension_semantics=("parallel", "parallel", "arbitrary"),
            vmem_limit_bytes=VMEM_LIMIT,
        ),
    )(x, gamma, beta, w, b)


# --------------------------------------------------------------------------------------
# Kernel 2: scaled-dot-product attention per (batch, head)
# --------------------------------------------------------------------------------------
def _attention_kernel(q_ref, k_ref, v_ref, m_ref, o_ref, *, scale):
    # q/k/v: [S, hd] bf16   mask: [S, S] f32   out: [S, hd] bf16
    q = q_ref[...]
    k = k_ref[...]
    v = v_ref[...]
    s = jax.lax.dot_general(q, k, (((1,), (1,)), ((), ())),
                            preferred_element_type=jnp.float32)
    s = s * scale + m_ref[...].astype(jnp.float32)
    s = s - jnp.max(s, axis=-1, keepdims=True)
    p = jnp.exp(s)
    p = p / jnp.sum(p, axis=-1, keepdims=True)
    ctx = jnp.dot(p.astype(v.dtype), v, preferred_element_type=jnp.float32)
    o_ref[...] = ctx.astype(o_ref.dtype)


def attention(q, k, v, mask, scale):
    B, H, S, hd = q.shape
    kern = functools.partial(_attention_kernel, scale=scale)
    return pl.pallas_call(
        kern,
        out_shape=jax.ShapeDtypeStruct((B, H, S, hd), q.dtype),
        grid_spec=pltpu.PrefetchScalarGridSpec(
            num_scalar_prefetch=0,
            grid=(B, H),
            in_specs=[
                pl.BlockSpec((None, None, S, hd), lambda bi, hi: (bi, hi, 0, 0)),
                pl.BlockSpec((None, None, S, hd), lambda bi, hi: (bi, hi, 0, 0)),
                pl.BlockSpec((None, None, S, hd), lambda bi, hi: (bi, hi, 0, 0)),
                pl.BlockSpec((None, S, S), lambda bi, hi: (bi, 0, 0)),
            ],
            out_specs=pl.BlockSpec((None, None, S, hd), lambda bi, hi: (bi, hi, 0, 0)),
        ),
        compiler_params=pltpu.CompilerParams(
            dimension_semantics=("parallel", "parallel"),
            vmem_limit_bytes=VMEM_LIMIT,
        ),
    )(q, k, v, mask)


# --------------------------------------------------------------------------------------
# Kernel 3: attention output projection + bias + residual
# --------------------------------------------------------------------------------------
def _dense_residual_kernel(ctx_ref, x_ref, w_ref, b_ref, out_ref):
    y = jnp.dot(ctx_ref[...], w_ref[...], preferred_element_type=jnp.float32)
    out_ref[...] = (y + b_ref[...] + x_ref[...].astype(jnp.float32)).astype(out_ref.dtype)


def dense_residual(ctx, x, w, b):
    B, S, D = x.shape
    N = w.shape[1]  # == D
    TS = _tile(S, 256, 8)
    TN = _tile(N, 512, 128)
    return pl.pallas_call(
        _dense_residual_kernel,
        out_shape=jax.ShapeDtypeStruct((B, S, N), jnp.float32),
        grid_spec=pltpu.PrefetchScalarGridSpec(
            num_scalar_prefetch=0,
            grid=(B, S // TS, N // TN),
            in_specs=[
                pl.BlockSpec((None, TS, D), lambda bi, si, ni: (bi, si, 0)),
                pl.BlockSpec((None, TS, TN), lambda bi, si, ni: (bi, si, ni)),
                pl.BlockSpec((D, TN), lambda bi, si, ni: (0, ni)),
                pl.BlockSpec((1, TN), lambda bi, si, ni: (0, ni)),
            ],
            out_specs=pl.BlockSpec((None, TS, TN), lambda bi, si, ni: (bi, si, ni)),
        ),
        compiler_params=pltpu.CompilerParams(
            dimension_semantics=("parallel", "parallel", "parallel"),
            vmem_limit_bytes=VMEM_LIMIT,
        ),
    )(ctx, x, w, b)


# --------------------------------------------------------------------------------------
# Kernel 4: LN2 + MLP (c_fc -> QuickGELU -> c_proj) + residual, tiled over the 4*D dim
# --------------------------------------------------------------------------------------
def _mlp_residual_kernel(x_ref, g_ref, beta_ref, w1_ref, b1_ref, w2_ref, b2_ref,
                         out_ref, h_ref, acc_ref):
    f = pl.program_id(2)

    @pl.when(f == 0)
    def _():
        x = x_ref[...].astype(jnp.float32)
        mean = jnp.mean(x, axis=-1, keepdims=True)
        var = jnp.mean((x - mean) ** 2, axis=-1, keepdims=True)
        h = (x - mean) * jax.lax.rsqrt(var + LN_EPS)
        h = h * g_ref[...] + beta_ref[...]
        h_ref[...] = h.astype(h_ref.dtype)
        acc_ref[...] = jnp.zeros_like(acc_ref)

    u = jnp.dot(h_ref[...], w1_ref[...], preferred_element_type=jnp.float32) + b1_ref[...]
    u = u * jax.nn.sigmoid(1.702 * u)                    # QuickGELU in f32
    acc_ref[...] += jnp.dot(u.astype(w2_ref.dtype), w2_ref[...],
                            preferred_element_type=jnp.float32)

    @pl.when(f == pl.num_programs(2) - 1)
    def _():
        y = acc_ref[...] + b2_ref[...] + x_ref[...].astype(jnp.float32)
        out_ref[...] = y.astype(out_ref.dtype)


def mlp_residual(x, gamma, beta, w1, b1, w2, b2):
    B, S, D = x.shape
    FF = w1.shape[1]
    TS = _tile(S, 256, 8)
    TFF = _tile(FF, 512, 128)
    return pl.pallas_call(
        _mlp_residual_kernel,
        out_shape=jax.ShapeDtypeStruct((B, S, D), jnp.float32),
        grid_spec=pltpu.PrefetchScalarGridSpec(
            num_scalar_prefetch=0,
            grid=(B, S // TS, FF // TFF),
            in_specs=[
                pl.BlockSpec((None, TS, D), lambda bi, si, fi: (bi, si, 0)),
                pl.BlockSpec((1, D), lambda bi, si, fi: (0, 0)),
                pl.BlockSpec((1, D), lambda bi, si, fi: (0, 0)),
                pl.BlockSpec((D, TFF), lambda bi, si, fi: (0, fi)),
                pl.BlockSpec((1, TFF), lambda bi, si, fi: (0, fi)),
                pl.BlockSpec((TFF, D), lambda bi, si, fi: (fi, 0)),
                pl.BlockSpec((1, D), lambda bi, si, fi: (0, 0)),
            ],
            out_specs=pl.BlockSpec((None, TS, D), lambda bi, si, fi: (bi, si, 0)),
            scratch_shapes=[pltpu.VMEM((TS, D), MATMUL_DTYPE),
                            pltpu.VMEM((TS, D), jnp.float32)],
        ),
        compiler_params=pltpu.CompilerParams(
            dimension_semantics=("parallel", "parallel", "arbitrary"),
            vmem_limit_bytes=VMEM_LIMIT,
        ),
    )(x, gamma, beta, w1, b1, w2, b2)


# --------------------------------------------------------------------------------------
# Layer / model wrappers
# --------------------------------------------------------------------------------------
def residual_attention_block(x, mask, lp, heads):
    B, S, D = x.shape
    hd = D // heads

    qkv = ln_dense(x, lp["ln1_g"], lp["ln1_b"], lp["w_qkv"], lp["b_qkv"])   # [B,S,3D] bf16
    q, k, v = qkv[..., :D], qkv[..., D:2 * D], qkv[..., 2 * D:]

    def split_heads(t):
        return t.reshape(B, S, heads, hd).transpose(0, 2, 1, 3)             # [B,H,S,hd]

    ctx = attention(split_heads(q), split_heads(k), split_heads(v), mask, scale=hd ** -0.5)
    ctx = ctx.transpose(0, 2, 1, 3).reshape(B, S, D)                         # [B,S,D] bf16

    x = dense_residual(ctx, x, lp["w_o"], lp["b_o"])                         # f32
    x = mlp_residual(x, lp["ln2_g"], lp["ln2_b"],
                     lp["w_fc"], lp["b_fc"], lp["w_proj"], lp["b_proj"])     # f32
    return x


def transformer_forward(x_sbd, attn_mask, params, heads):
    # x_sbd: [S, B, D] (PyTorch nn.MultiheadAttention LND layout); attn_mask: [B, S, S] additive
    x = jnp.transpose(x_sbd, (1, 0, 2)).astype(jnp.float32)
    mask = attn_mask.astype(jnp.float32)
    for lp in params:
        x = residual_attention_block(x, mask, lp, heads)
    return jnp.transpose(x, (1, 0, 2))


# --------------------------------------------------------------------------------------
# Parameters (torch layout), one-time preparation (pre-transpose + bf16 cast), and reference
# --------------------------------------------------------------------------------------
def init_params(key, width, layers, heads):
    assert width % heads == 0
    d = width
    params = []
    for _ in range(layers):
        key, *ks = jax.random.split(key, 9)
        params.append({
            "ln1_g": jnp.ones((d,), jnp.float32),
            "ln1_b": jnp.zeros((d,), jnp.float32),
            "in_proj_w": 0.05 * jax.random.normal(ks[0], (3 * d, d), jnp.float32),
            "in_proj_b": 0.05 * jax.random.normal(ks[1], (3 * d,), jnp.float32),
            "out_proj_w": 0.05 * jax.random.normal(ks[2], (d, d), jnp.float32),
            "out_proj_b": 0.05 * jax.random.normal(ks[3], (d,), jnp.float32),
            "ln2_g": jnp.ones((d,), jnp.float32),
            "ln2_b": jnp.zeros((d,), jnp.float32),
            "fc_w": 0.05 * jax.random.normal(ks[4], (4 * d, d), jnp.float32),
            "fc_b": 0.05 * jax.random.normal(ks[5], (4 * d,), jnp.float32),
            "proj_w": 0.05 * jax.random.normal(ks[6], (d, 4 * d), jnp.float32),
            "proj_b": 0.05 * jax.random.normal(ks[7], (d,), jnp.float32),
        })
    return params


def prepare_params(torch_params, dtype=MATMUL_DTYPE):
    """One-time: transpose nn.Linear weights to (in, out), cast to bf16, reshape biases."""
    prepared = []
    for p in torch_params:
        d = p["ln1_g"].shape[0]
        prepared.append({
            "ln1_g": p["ln1_g"].reshape(1, d),
            "ln1_b": p["ln1_b"].reshape(1, d),
            "w_qkv": p["in_proj_w"].T.astype(dtype),
            "b_qkv": p["in_proj_b"].reshape(1, -1),
            "w_o": p["out_proj_w"].T.astype(dtype),
            "b_o": p["out_proj_b"].reshape(1, -1),
            "ln2_g": p["ln2_g"].reshape(1, d),
            "ln2_b": p["ln2_b"].reshape(1, d),
            "w_fc": p["fc_w"].T.astype(dtype),
            "b_fc": p["fc_b"].reshape(1, -1),
            "w_proj": p["proj_w"].T.astype(dtype),
            "b_proj": p["proj_b"].reshape(1, -1),
        })
    return prepared


def _layer_norm_ref(x, g, b):
    mean = jnp.mean(x, axis=-1, keepdims=True)
    var = jnp.mean((x - mean) ** 2, axis=-1, keepdims=True)
    return (x - mean) / jnp.sqrt(var + LN_EPS) * g + b


def reference_transformer(x_sbd, mask, torch_params, heads):
    x = jnp.transpose(x_sbd, (1, 0, 2))
    B, S, D = x.shape
    hd = D // heads
    for p in torch_params:
        h = _layer_norm_ref(x, p["ln1_g"], p["ln1_b"])
        qkv = h @ p["in_proj_w"].T + p["in_proj_b"]
        q, k, v = jnp.split(qkv, 3, axis=-1)

        def sh(t):
            return t.reshape(B, S, heads, hd).transpose(0, 2, 1, 3)

        q, k, v = sh(q), sh(k), sh(v)
        s = jnp.einsum("bhqd,bhkd->bhqk", q, k) * (hd ** -0.5) + mask[:, None]
        a = jax.nn.softmax(s, axis=-1)
        ctx = jnp.einsum("bhqk,bhkd->bhqd", a, v)
        ctx = ctx.transpose(0, 2, 1, 3).reshape(B, S, D)
        x = x + ctx @ p["out_proj_w"].T + p["out_proj_b"]
        h2 = _layer_norm_ref(x, p["ln2_g"], p["ln2_b"])
        u = h2 @ p["fc_w"].T + p["fc_b"]
        u = u * jax.nn.sigmoid(1.702 * u)
        x = x + u @ p["proj_w"].T + p["proj_b"]
    return jnp.transpose(x, (1, 0, 2))


if __name__ == "__main__":
    WIDTH, LAYERS, HEADS = 32, 2, 4
    SEQ, BATCH = 8, 2

    key = jax.random.PRNGKey(0)
    kx, km, kp = jax.random.split(key, 3)

    x = jax.random.normal(kx, (SEQ, BATCH, WIDTH), jnp.float32)      # [L, N, E]
    # additive float attention mask [B, S, S]; diagonal always visible
    mask = jnp.where(jax.random.uniform(km, (BATCH, SEQ, SEQ)) < 0.2, -1e4, 0.0)
    mask = mask.at[:, jnp.arange(SEQ), jnp.arange(SEQ)].set(0.0).astype(jnp.float32)

    torch_params = init_params(kp, WIDTH, LAYERS, HEADS)
    prepared = prepare_params(torch_params)

    fwd = jax.jit(functools.partial(transformer_forward, heads=HEADS))
    out = jax.block_until_ready(fwd(x, mask, prepared))

    ref = reference_transformer(x, mask, torch_params, HEADS)
    assert out.shape == x.shape
    assert jnp.allclose(out, ref, atol=5e-2, rtol=5e-2), float(jnp.max(jnp.abs(out - ref)))
    print("KERNEL_OK")
</pallas_src>

<mosaic_0001>
module attributes {stable_mosaic.version = 11 : i64} {
  func.func @_ln_dense_kernel(%arg0: i32, %arg1: i32, %arg2: i32, %arg3: memref<1x8x32xf32, #tpu.memory_space<vmem>>, %arg4: memref<1x32xf32, #tpu.memory_space<vmem>>, %arg5: memref<1x32xf32, #tpu.memory_space<vmem>>, %arg6: memref<32x96xbf16, #tpu.memory_space<vmem>>, %arg7: memref<1x96xf32, #tpu.memory_space<vmem>>, %arg8: memref<1x8x96xbf16, #tpu.memory_space<vmem>>, %arg9: memref<8x32xbf16, #tpu.memory_space<vmem>>) attributes {dimension_semantics = [#tpu.dimension_semantics<parallel>, #tpu.dimension_semantics<parallel>, #tpu.dimension_semantics<arbitrary>], iteration_bounds = array<i64: 2, 1, 1>, scalar_prefetch = 0 : i64, scratch_operands = 1 : i64, tpu.core_type = #tpu.core_type<tc>, window_params = [{transform_indices = @transform_0, window_bounds = array<i64: 1, 8, 32>}, {pipeline_mode = #tpu.pipeline_mode<synchronous>, transform_indices = @transform_1, window_bounds = array<i64: 1, 32>}, {pipeline_mode = #tpu.pipeline_mode<synchronous>, transform_indices = @transform_2, window_bounds = array<i64: 1, 32>}, {transform_indices = @transform_3, window_bounds = array<i64: 32, 96>}, {transform_indices = @transform_4, window_bounds = array<i64: 1, 96>}, {transform_indices = @transform_5, window_bounds = array<i64: 1, 8, 96>}]} {
    %c0_i32 = arith.constant 0 : i32
    %0 = arith.cmpi eq, %arg2, %c0_i32 : i32
    %1 = arith.extui %0 : i1 to i32
    %c0_i32_0 = arith.constant 0 : i32
    %2 = arith.cmpi ne, %1, %c0_i32_0 : i32
    scf.if %2 {
      %c0_9 = arith.constant 0 : index
      %c0_10 = arith.constant 0 : index
      %c0_11 = arith.constant 0 : index
      %13 = vector.load %arg3[%c0_9, %c0_10, %c0_11] : memref<1x8x32xf32, #tpu.memory_space<vmem>>, vector<1x8x32xf32>
      %14 = vector.shape_cast %13 : vector<1x8x32xf32> to vector<8x32xf32>
      %cst_12 = arith.constant dense<0.000000e+00> : vector<8xf32>
      %15 = vector.multi_reduction <add>, %14, %cst_12 [1] : vector<8x32xf32> to vector<8xf32>
      %16 = vector.shape_cast %15 : vector<8xf32> to vector<8x1xf32>
      %cst_13 = arith.constant 3.200000e+01 : f32
      %17 = vector.broadcast %cst_13 : f32 to vector<8x1xf32>
      %18 = arith.divf %16, %17 : vector<8x1xf32>
      %19 = vector.broadcast %18 : vector<8x1xf32> to vector<8x32xf32>
      %20 = arith.subf %14, %19 : vector<8x32xf32>
      %21 = arith.mulf %20, %20 : vector<8x32xf32>
      %cst_14 = arith.constant dense<0.000000e+00> : vector<8xf32>
      %22 = vector.multi_reduction <add>, %21, %cst_14 [1] : vector<8x32xf32> to vector<8xf32>
      %23 = vector.shape_cast %22 : vector<8xf32> to vector<8x1xf32>
      %cst_15 = arith.constant 3.200000e+01 : f32
      %24 = vector.broadcast %cst_15 : f32 to vector<8x1xf32>
      %25 = arith.divf %23, %24 : vector<8x1xf32>
      %26 = vector.broadcast %18 : vector<8x1xf32> to vector<8x32xf32>
      %27 = arith.subf %14, %26 : vector<8x32xf32>
      %cst_16 = arith.constant 9.99999974E-6 : f32
      %28 = vector.broadcast %cst_16 : f32 to vector<8x1xf32>
      %29 = arith.addf %25, %28 : vector<8x1xf32>
      %30 = math.rsqrt %29 : vector<8x1xf32>
      %31 = vector.broadcast %30 : vector<8x1xf32> to vector<8x32xf32>
      %32 = arith.mulf %27, %31 : vector<8x32xf32>
      %c0_17 = arith.constant 0 : index
      %c0_18 = arith.constant 0 : index
      %33 = vector.load %arg4[%c0_17, %c0_18] : memref<1x32xf32, #tpu.memory_space<vmem>>, vector<1x32xf32>
      %34 = vector.broadcast %33 : vector<1x32xf32> to vector<8x32xf32>
      %35 = arith.mulf %32, %34 : vector<8x32xf32>
      %c0_19 = arith.constant 0 : index
      %c0_20 = arith.constant 0 : index
      %36 = vector.load %arg5[%c0_19, %c0_20] : memref<1x32xf32, #tpu.memory_space<vmem>>, vector<1x32xf32>
      %37 = vector.broadcast %36 : vector<1x32xf32> to vector<8x32xf32>
      %38 = arith.addf %35, %37 : vector<8x32xf32>
      %39 = arith.truncf %38 : vector<8x32xf32> to vector<8x32xbf16>
      %c0_21 = arith.constant 0 : index
      %c0_22 = arith.constant 0 : index
      %40 = vector.load %arg9[%c0_21, %c0_22] : memref<8x32xbf16, #tpu.memory_space<vmem>>, vector<8x32xbf16>
      tpu.vector_store %arg9[%c0_21, %c0_22], %39 {strides = array<i32>} : memref<8x32xbf16, #tpu.memory_space<vmem>>, vector<8x32xbf16>,
    } else {
    }
    %c0 = arith.constant 0 : index
    %c0_1 = arith.constant 0 : index
    %3 = vector.load %arg9[%c0, %c0_1] : memref<8x32xbf16, #tpu.memory_space<vmem>>, vector<8x32xbf16>
    %c0_2 = arith.constant 0 : index
    %c0_3 = arith.constant 0 : index
    %4 = vector.load %arg6[%c0_2, %c0_3] : memref<32x96xbf16, #tpu.memory_space<vmem>>, vector<32x96xbf16>
    %cst = arith.constant dense<0.000000e+00> : vector<8x96xf32>
    %5 = tpu.matmul %3, %4, %cst {dimension_numbers = #tpu.dot_dimension_numbers<[1], [0], [0], [1], [0, 0, 1, 1], [], []>} : vector<8x32xbf16>, vector<32x96xbf16>, vector<8x96xf32> -> vector<8x96xf32>
    %c0_4 = arith.constant 0 : index
    %c0_5 = arith.constant 0 : index
    %6 = vector.load %arg7[%c0_4, %c0_5] : memref<1x96xf32, #tpu.memory_space<vmem>>, vector<1x96xf32>
    %7 = vector.broadcast %6 : vector<1x96xf32> to vector<8x96xf32>
    %8 = arith.addf %5, %7 : vector<8x96xf32>
    %9 = arith.truncf %8 : vector<8x96xf32> to vector<8x96xbf16>
    %c0_6 = arith.constant 0 : index
    %c0_7 = arith.constant 0 : index
    %c0_8 = arith.constant 0 : index
    %10 = vector.load %arg8[%c0_6, %c0_7, %c0_8] : memref<1x8x96xbf16, #tpu.memory_space<vmem>>, vector<1x8x96xbf16>
    %11 = vector.shape_cast %10 : vector<1x8x96xbf16> to vector<8x96xbf16>
    %12 = vector.shape_cast %9 : vector<8x96xbf16> to vector<1x8x96xbf16>
    tpu.vector_store %arg8[%c0_6, %c0_7, %c0_8], %12 {strides = array<i32>} : memref<1x8x96xbf16, #tpu.memory_space<vmem>>, vector<1x8x96xbf16>,
    return
  }
  func.func @transform_0(%arg0: i32, %arg1: i32, %arg2: i32) -> (i32, i32, i32) {
    %c0_i32 = arith.constant 0 : i32
    %c0_i32_0 = arith.constant 0 : i32
    return %arg0, %arg1, %c0_i32 : i32, i32, i32
  }
  func.func @transform_1(%arg0: i32, %arg1: i32, %arg2: i32) -> (i32, i32) {
    %c0_i32 = arith.constant 0 : i32
    %c0_i32_0 = arith.constant 0 : i32
    %c0_i32_1 = arith.constant 0 : i32
    return %c0_i32, %c0_i32_0 : i32, i32
  }
  func.func @transform_2(%arg0: i32, %arg1: i32, %arg2: i32) -> (i32, i32) {
    %c0_i32 = arith.constant 0 : i32
    %c0_i32_0 = arith.constant 0 : i32
    %c0_i32_1 = arith.constant 0 : i32
    return %c0_i32, %c0_i32_0 : i32, i32
  }
  func.func @transform_3(%arg0: i32, %arg1: i32, %arg2: i32) -> (i32, i32) {
    %c0_i32 = arith.constant 0 : i32
    %c0_i32_0 = arith.constant 0 : i32
    return %c0_i32, %arg2 : i32, i32
  }
  func.func @transform_4(%arg0: i32, %arg1: i32, %arg2: i32) -> (i32, i32) {
    %c0_i32 = arith.constant 0 : i32
    %c0_i32_0 = arith.constant 0 : i32
    return %c0_i32, %arg2 : i32, i32
  }
  func.func @transform_5(%arg0: i32, %arg1: i32, %arg2: i32) -> (i32, i32, i32) {
    %c0_i32 = arith.constant 0 : i32
    return %arg0, %arg1, %arg2 : i32, i32, i32
  }
}

module attributes {stable_mosaic.version = 11 : i64} {
  func.func @_attention_kernel(%arg0: i32, %arg1: i32, %arg2: memref<1x1x8x8xbf16, #tpu.memory_space<vmem>>, %arg3: memref<1x1x8x8xbf16, #tpu.memory_space<vmem>>, %arg4: memref<1x1x8x8xbf16, #tpu.memory_space<vmem>>, %arg5: memref<1x8x8xf32, #tpu.memory_space<vmem>>, %arg6: memref<1x1x8x8xbf16, #tpu.memory_space<vmem>>) attributes {dimension_semantics = [#tpu.dimension_semantics<parallel>, #tpu.dimension_semantics<parallel>], iteration_bounds = array<i64: 2, 4>, scalar_prefetch = 0 : i64, scratch_operands = 0 : i64, tpu.core_type = #tpu.core_type<tc>, window_params = [{transform_indices = @transform_0, window_bounds = array<i64: 1, 1, 8, 8>}, {transform_indices = @transform_1, window_bounds = array<i64: 1, 1, 8, 8>}, {transform_indices = @transform_2, window_bounds = array<i64: 1, 1, 8, 8>}, {transform_indices = @transform_3, window_bounds = array<i64: 1, 8, 8>}, {transform_indices = @transform_4, window_bounds = array<i64: 1, 1, 8, 8>}]} {
    %c0 = arith.constant 0 : index
    %c0_0 = arith.constant 0 : index
    %c0_1 = arith.constant 0 : index
    %c0_2 = arith.constant 0 : index
    %0 = vector.load %arg2[%c0, %c0_0, %c0_1, %c0_2] : memref<1x1x8x8xbf16, #tpu.memory_space<vmem>>, vector<1x1x8x8xbf16>
    %1 = vector.shape_cast %0 : vector<1x1x8x8xbf16> to vector<8x8xbf16>
    %c0_3 = arith.constant 0 : index
    %c0_4 = arith.constant 0 : index
    %c0_5 = arith.constant 0 : index
    %c0_6 = arith.constant 0 : index
    %2 = vector.load %arg3[%c0_3, %c0_4, %c0_5, %c0_6] : memref<1x1x8x8xbf16, #tpu.memory_space<vmem>>, vector<1x1x8x8xbf16>
    %3 = vector.shape_cast %2 : vector<1x1x8x8xbf16> to vector<8x8xbf16>
    %c0_7 = arith.constant 0 : index
    %c0_8 = arith.constant 0 : index
    %c0_9 = arith.constant 0 : index
    %c0_10 = arith.constant 0 : index
    %4 = vector.load %arg4[%c0_7, %c0_8, %c0_9, %c0_10] : memref<1x1x8x8xbf16, #tpu.memory_space<vmem>>, vector<1x1x8x8xbf16>
    %5 = vector.shape_cast %4 : vector<1x1x8x8xbf16> to vector<8x8xbf16>
    %cst = arith.constant dense<0.000000e+00> : vector<8x8xf32>
    %6 = tpu.matmul %1, %3, %cst {dimension_numbers = #tpu.dot_dimension_numbers<[1], [1], [0], [0], [0, 0, 1, 0], [], []>} : vector<8x8xbf16>, vector<8x8xbf16>, vector<8x8xf32> -> vector<8x8xf32>
    %cst_11 = arith.constant 0.353553385 : f32
    %7 = vector.broadcast %cst_11 : f32 to vector<8x8xf32>
    %8 = arith.mulf %6, %7 : vector<8x8xf32>
    %c0_12 = arith.constant 0 : index
    %c0_13 = arith.constant 0 : index
    %c0_14 = arith.constant 0 : index
    %9 = vector.load %arg5[%c0_12, %c0_13, %c0_14] : memref<1x8x8xf32, #tpu.memory_space<vmem>>, vector<1x8x8xf32>
    %10 = vector.shape_cast %9 : vector<1x8x8xf32> to vector<8x8xf32>
    %11 = arith.addf %8, %10 : vector<8x8xf32>
    %cst_15 = arith.constant dense<0xFF800000> : vector<8xf32>
    %12 = vector.multi_reduction <maximumf>, %11, %cst_15 [1] : vector<8x8xf32> to vector<8xf32>
    %13 = vector.shape_cast %12 : vector<8xf32> to vector<8x1xf32>
    %14 = vector.broadcast %13 : vector<8x1xf32> to vector<8x8xf32>
    %15 = arith.subf %11, %14 : vector<8x8xf32>
    %16 = math.exp %15 : vector<8x8xf32>
    %cst_16 = arith.constant dense<0.000000e+00> : vector<8xf32>
    %17 = vector.multi_reduction <add>, %16, %cst_16 [1] : vector<8x8xf32> to vector<8xf32>
    %18 = vector.shape_cast %17 : vector<8xf32> to vector<8x1xf32>
    %19 = vector.broadcast %18 : vector<8x1xf32> to vector<8x8xf32>
    %20 = arith.divf %16, %19 : vector<8x8xf32>
    %21 = arith.truncf %20 : vector<8x8xf32> to vector<8x8xbf16>
    %cst_17 = arith.constant dense<0.000000e+00> : vector<8x8xf32>
    %22 = tpu.matmul %21, %5, %cst_17 {dimension_numbers = #tpu.dot_dimension_numbers<[1], [0], [0], [1], [0, 0, 1, 1], [], []>} : vector<8x8xbf16>, vector<8x8xbf16>, vector<8x8xf32> -> vector<8x8xf32>
    %23 = arith.truncf %22 : vector<8x8xf32> to vector<8x8xbf16>
    %c0_18 = arith.constant 0 : index
    %c0_19 = arith.constant 0 : index
    %c0_20 = arith.constant 0 : index
    %c0_21 = arith.constant 0 : index
    %24 = vector.load %arg6[%c0_18, %c0_19, %c0_20, %c0_21] : memref<1x1x8x8xbf16, #tpu.memory_space<vmem>>, vector<1x1x8x8xbf16>
    %25 = vector.shape_cast %24 : vector<1x1x8x8xbf16> to vector<8x8xbf16>
    %26 = vector.shape_cast %23 : vector<8x8xbf16> to vector<1x1x8x8xbf16>
    tpu.vector_store %arg6[%c0_18, %c0_19, %c0_20, %c0_21], %26 {strides = array<i32>} : memref<1x1x8x8xbf16, #tpu.memory_space<vmem>>, vector<1x1x8x8xbf16>,
    return
  }
  func.func @transform_0(%arg0: i32, %arg1: i32) -> (i32, i32, i32, i32) {
    %c0_i32 = arith.constant 0 : i32
    %c0_i32_0 = arith.constant 0 : i32
    %c0_i32_1 = arith.constant 0 : i32
    return %arg0, %arg1, %c0_i32, %c0_i32_0 : i32, i32, i32, i32
  }
  func.func @transform_1(%arg0: i32, %arg1: i32) -> (i32, i32, i32, i32) {
    %c0_i32 = arith.constant 0 : i32
    %c0_i32_0 = arith.constant 0 : i32
    %c0_i32_1 = arith.constant 0 : i32
    return %arg0, %arg1, %c0_i32, %c0_i32_0 : i32, i32, i32, i32
  }
  func.func @transform_2(%arg0: i32, %arg1: i32) -> (i32, i32, i32, i32) {
    %c0_i32 = arith.constant 0 : i32
    %c0_i32_0 = arith.constant 0 : i32
    %c0_i32_1 = arith.constant 0 : i32
    return %arg0, %arg1, %c0_i32, %c0_i32_0 : i32, i32, i32, i32
  }
  func.func @transform_3(%arg0: i32, %arg1: i32) -> (i32, i32, i32) {
    %c0_i32 = arith.constant 0 : i32
    %c0_i32_0 = arith.constant 0 : i32
    %c0_i32_1 = arith.constant 0 : i32
    return %arg0, %c0_i32, %c0_i32_0 : i32, i32, i32
  }
  func.func @transform_4(%arg0: i32, %arg1: i32) -> (i32, i32, i32, i32) {
    %c0_i32 = arith.constant 0 : i32
    %c0_i32_0 = arith.constant 0 : i32
    %c0_i32_1 = arith.constant 0 : i32
    return %arg0, %arg1, %c0_i32, %c0_i32_0 : i32, i32, i32, i32
  }
}

module attributes {stable_mosaic.version = 11 : i64} {
  func.func @_dense_residual_kernel(%arg0: i32, %arg1: i32, %arg2: i32, %arg3: memref<1x8x32xbf16, #tpu.memory_space<vmem>>, %arg4: memref<1x8x32xf32, #tpu.memory_space<vmem>>, %arg5: memref<32x32xbf16, #tpu.memory_space<vmem>>, %arg6: memref<1x32xf32, #tpu.memory_space<vmem>>, %arg7: memref<1x8x32xf32, #tpu.memory_space<vmem>>) attributes {dimension_semantics = [#tpu.dimension_semantics<parallel>, #tpu.dimension_semantics<parallel>, #tpu.dimension_semantics<parallel>], iteration_bounds = array<i64: 2, 1, 1>, scalar_prefetch = 0 : i64, scratch_operands = 0 : i64, tpu.core_type = #tpu.core_type<tc>, window_params = [{transform_indices = @transform_0, window_bounds = array<i64: 1, 8, 32>}, {transform_indices = @transform_1, window_bounds = array<i64: 1, 8, 32>}, {transform_indices = @transform_2, window_bounds = array<i64: 32, 32>}, {transform_indices = @transform_3, window_bounds = array<i64: 1, 32>}, {transform_indices = @transform_4, window_bounds = array<i64: 1, 8, 32>}]} {
    %c0 = arith.constant 0 : index
    %c0_0 = arith.constant 0 : index
    %c0_1 = arith.constant 0 : index
    %0 = vector.load %arg3[%c0, %c0_0, %c0_1] : memref<1x8x32xbf16, #tpu.memory_space<vmem>>, vector<1x8x32xbf16>
    %1 = vector.shape_cast %0 : vector<1x8x32xbf16> to vector<8x32xbf16>
    %c0_2 = arith.constant 0 : index
    %c0_3 = arith.constant 0 : index
    %2 = vector.load %arg5[%c0_2, %c0_3] : memref<32x32xbf16, #tpu.memory_space<vmem>>, vector<32x32xbf16>
    %cst = arith.constant dense<0.000000e+00> : vector<8x32xf32>
    %3 = tpu.matmul %1, %2, %cst {dimension_numbers = #tpu.dot_dimension_numbers<[1], [0], [0], [1], [0, 0, 1, 1], [], []>} : vector<8x32xbf16>, vector<32x32xbf16>, vector<8x32xf32> -> vector<8x32xf32>
    %c0_4 = arith.constant 0 : index
    %c0_5 = arith.constant 0 : index
    %4 = vector.load %arg6[%c0_4, %c0_5] : memref<1x32xf32, #tpu.memory_space<vmem>>, vector<1x32xf32>
    %5 = vector.broadcast %4 : vector<1x32xf32> to vector<8x32xf32>
    %6 = arith.addf %3, %5 : vector<8x32xf32>
    %c0_6 = arith.constant 0 : index
    %c0_7 = arith.constant 0 : index
    %c0_8 = arith.constant 0 : index
    %7 = vector.load %arg4[%c0_6, %c0_7, %c0_8] : memref<1x8x32xf32, #tpu.memory_space<vmem>>, vector<1x8x32xf32>
    %8 = vector.shape_cast %7 : vector<1x8x32xf32> to vector<8x32xf32>
    %9 = arith.addf %6, %8 : vector<8x32xf32>
    %c0_9 = arith.constant 0 : index
    %c0_10 = arith.constant 0 : index
    %c0_11 = arith.constant 0 : index
    %10 = vector.load %arg7[%c0_9, %c0_10, %c0_11] : memref<1x8x32xf32, #tpu.memory_space<vmem>>, vector<1x8x32xf32>
    %11 = vector.shape_cast %10 : vector<1x8x32xf32> to vector<8x32xf32>
    %12 = vector.shape_cast %9 : vector<8x32xf32> to vector<1x8x32xf32>
    tpu.vector_store %arg7[%c0_9, %c0_10, %c0_11], %12 {strides = array<i32>} : memref<1x8x32xf32, #tpu.memory_space<vmem>>, vector<1x8x32xf32>,
    return
  }
  func.func @transform_0(%arg0: i32, %arg1: i32, %arg2: i32) -> (i32, i32, i32) {
    %c0_i32 = arith.constant 0 : i32
    %c0_i32_0 = arith.constant 0 : i32
    return %arg0, %arg1, %c0_i32 : i32, i32, i32
  }
  func.func @transform_1(%arg0: i32, %arg1: i32, %arg2: i32) -> (i32, i32, i32) {
    %c0_i32 = arith.constant 0 : i32
    return %arg0, %arg1, %arg2 : i32, i32, i32
  }
  func.func @transform_2(%arg0: i32, %arg1: i32, %arg2: i32) -> (i32, i32) {
    %c0_i32 = arith.constant 0 : i32
    %c0_i32_0 = arith.constant 0 : i32
    return %c0_i32, %arg2 : i32, i32
  }
  func.func @transform_3(%arg0: i32, %arg1: i32, %arg2: i32) -> (i32, i32) {
    %c0_i32 = arith.constant 0 : i32
    %c0_i32_0 = arith.constant 0 : i32
    return %c0_i32, %arg2 : i32, i32
  }
  func.func @transform_4(%arg0: i32, %arg1: i32, %arg2: i32) -> (i32, i32, i32) {
    %c0_i32 = arith.constant 0 : i32
    return %arg0, %arg1, %arg2 : i32, i32, i32
  }
}

module attributes {stable_mosaic.version = 11 : i64} {
  func.func @_mlp_residual_kernel(%arg0: i32, %arg1: i32, %arg2: i32, %arg3: memref<1x8x32xf32, #tpu.memory_space<vmem>>, %arg4: memref<1x32xf32, #tpu.memory_space<vmem>>, %arg5: memref<1x32xf32, #tpu.memory_space<vmem>>, %arg6: memref<32x128xbf16, #tpu.memory_space<vmem>>, %arg7: memref<1x128xf32, #tpu.memory_space<vmem>>, %arg8: memref<128x32xbf16, #tpu.memory_space<vmem>>, %arg9: memref<1x32xf32, #tpu.memory_space<vmem>>, %arg10: memref<1x8x32xf32, #tpu.memory_space<vmem>>, %arg11: memref<8x32xbf16, #tpu.memory_space<vmem>>, %arg12: memref<8x32xf32, #tpu.memory_space<vmem>>) attributes {dimension_semantics = [#tpu.dimension_semantics<parallel>, #tpu.dimension_semantics<parallel>, #tpu.dimension_semantics<arbitrary>], iteration_bounds = array<i64: 2, 1, 1>, scalar_prefetch = 0 : i64, scratch_operands = 2 : i64, tpu.core_type = #tpu.core_type<tc>, window_params = [{transform_indices = @transform_0, window_bounds = array<i64: 1, 8, 32>}, {pipeline_mode = #tpu.pipeline_mode<synchronous>, transform_indices = @transform_1, window_bounds = array<i64: 1, 32>}, {pipeline_mode = #tpu.pipeline_mode<synchronous>, transform_indices = @transform_2, window_bounds = array<i64: 1, 32>}, {transform_indices = @transform_3, window_bounds = array<i64: 32, 128>}, {transform_indices = @transform_4, window_bounds = array<i64: 1, 128>}, {transform_indices = @transform_5, window_bounds = array<i64: 128, 32>}, {pipeline_mode = #tpu.pipeline_mode<synchronous>, transform_indices = @transform_6, window_bounds = array<i64: 1, 32>}, {transform_indices = @transform_7, window_bounds = array<i64: 1, 8, 32>}]} {
    %c0_i32 = arith.constant 0 : i32
    %0 = arith.cmpi eq, %arg2, %c0_i32 : i32
    %1 = arith.extui %0 : i1 to i32
    %c0_i32_0 = arith.constant 0 : i32
    %2 = arith.cmpi ne, %1, %c0_i32_0 : i32
    scf.if %2 {
      %c0_17 = arith.constant 0 : index
      %c0_18 = arith.constant 0 : index
      %c0_19 = arith.constant 0 : index
      %26 = vector.load %arg3[%c0_17, %c0_18, %c0_19] : memref<1x8x32xf32, #tpu.memory_space<vmem>>, vector<1x8x32xf32>
      %27 = vector.shape_cast %26 : vector<1x8x32xf32> to vector<8x32xf32>
      %cst_20 = arith.constant dense<0.000000e+00> : vector<8xf32>
      %28 = vector.multi_reduction <add>, %27, %cst_20 [1] : vector<8x32xf32> to vector<8xf32>
      %29 = vector.shape_cast %28 : vector<8xf32> to vector<8x1xf32>
      %cst_21 = arith.constant 3.200000e+01 : f32
      %30 = vector.broadcast %cst_21 : f32 to vector<8x1xf32>
      %31 = arith.divf %29, %30 : vector<8x1xf32>
      %32 = vector.broadcast %31 : vector<8x1xf32> to vector<8x32xf32>
      %33 = arith.subf %27, %32 : vector<8x32xf32>
      %34 = arith.mulf %33, %33 : vector<8x32xf32>
      %cst_22 = arith.constant dense<0.000000e+00> : vector<8xf32>
      %35 = vector.multi_reduction <add>, %34, %cst_22 [1] : vector<8x32xf32> to vector<8xf32>
      %36 = vector.shape_cast %35 : vector<8xf32> to vector<8x1xf32>
      %cst_23 = arith.constant 3.200000e+01 : f32
      %37 = vector.broadcast %cst_23 : f32 to vector<8x1xf32>
      %38 = arith.divf %36, %37 : vector<8x1xf32>
      %39 = vector.broadcast %31 : vector<8x1xf32> to vector<8x32xf32>
      %40 = arith.subf %27, %39 : vector<8x32xf32>
      %cst_24 = arith.constant 9.99999974E-6 : f32
      %41 = vector.broadcast %cst_24 : f32 to vector<8x1xf32>
      %42 = arith.addf %38, %41 : vector<8x1xf32>
      %43 = math.rsqrt %42 : vector<8x1xf32>
      %44 = vector.broadcast %43 : vector<8x1xf32> to vector<8x32xf32>
      %45 = arith.mulf %40, %44 : vector<8x32xf32>
      %c0_25 = arith.constant 0 : index
      %c0_26 = arith.constant 0 : index
      %46 = vector.load %arg4[%c0_25, %c0_26] : memref<1x32xf32, #tpu.memory_space<vmem>>, vector<1x32xf32>
      %47 = vector.broadcast %46 : vector<1x32xf32> to vector<8x32xf32>
      %48 = arith.mulf %45, %47 : vector<8x32xf32>
      %c0_27 = arith.constant 0 : index
      %c0_28 = arith.constant 0 : index
      %49 = vector.load %arg5[%c0_27, %c0_28] : memref<1x32xf32, #tpu.memory_space<vmem>>, vector<1x32xf32>
      %50 = vector.broadcast %49 : vector<1x32xf32> to vector<8x32xf32>
      %51 = arith.addf %48, %50 : vector<8x32xf32>
      %52 = arith.truncf %51 : vector<8x32xf32> to vector<8x32xbf16>
      %c0_29 = arith.constant 0 : index
      %c0_30 = arith.constant 0 : index
      %53 = vector.load %arg11[%c0_29, %c0_30] : memref<8x32xbf16, #tpu.memory_space<vmem>>, vector<8x32xbf16>
      tpu.vector_store %arg11[%c0_29, %c0_30], %52 {strides = array<i32>} : memref<8x32xbf16, #tpu.memory_space<vmem>>, vector<8x32xbf16>,
      %cst_31 = arith.constant 0.000000e+00 : f32
      %54 = vector.broadcast %cst_31 : f32 to vector<8x32xf32>
      %c0_32 = arith.constant 0 : index
      %c0_33 = arith.constant 0 : index
      %55 = vector.load %arg12[%c0_32, %c0_33] : memref<8x32xf32, #tpu.memory_space<vmem>>, vector<8x32xf32>
      tpu.vector_store %arg12[%c0_32, %c0_33], %54 {strides = array<i32>} : memref<8x32xf32, #tpu.memory_space<vmem>>, vector<8x32xf32>,
    } else {
    }
    %c0 = arith.constant 0 : index
    %c0_1 = arith.constant 0 : index
    %3 = vector.load %arg11[%c0, %c0_1] : memref<8x32xbf16, #tpu.memory_space<vmem>>, vector<8x32xbf16>
    %c0_2 = arith.constant 0 : index
    %c0_3 = arith.constant 0 : index
    %4 = vector.load %arg6[%c0_2, %c0_3] : memref<32x128xbf16, #tpu.memory_space<vmem>>, vector<32x128xbf16>
    %cst = arith.constant dense<0.000000e+00> : vector<8x128xf32>
    %5 = tpu.matmul %3, %4, %cst {dimension_numbers = #tpu.dot_dimension_numbers<[1], [0], [0], [1], [0, 0, 1, 1], [], []>} : vector<8x32xbf16>, vector<32x128xbf16>, vector<8x128xf32> -> vector<8x128xf32>
    %c0_4 = arith.constant 0 : index
    %c0_5 = arith.constant 0 : index
    %6 = vector.load %arg7[%c0_4, %c0_5] : memref<1x128xf32, #tpu.memory_space<vmem>>, vector<1x128xf32>
    %7 = vector.broadcast %6 : vector<1x128xf32> to vector<8x128xf32>
    %8 = arith.addf %5, %7 : vector<8x128xf32>
    %cst_6 = arith.constant 1.702000e+00 : f32
    %9 = vector.broadcast %cst_6 : f32 to vector<8x128xf32>
    %10 = arith.mulf %9, %8 : vector<8x128xf32>
    %11 = arith.negf %10 : vector<8x128xf32>
    %12 = math.exp %11 : vector<8x128xf32>
    %cst_7 = arith.constant 1.000000e+00 : f32
    %13 = vector.broadcast %cst_7 : f32 to vector<8x128xf32>
    %14 = arith.addf %13, %12 : vector<8x128xf32>
    %15 = arith.divf %13, %14 : vector<8x128xf32>
    %16 = arith.mulf %8, %15 : vector<8x128xf32>
    %c0_8 = arith.constant 0 : index
    %c0_9 = arith.constant 0 : index
    %17 = vector.load %arg12[%c0_8, %c0_9] : memref<8x32xf32, #tpu.memory_space<vmem>>, vector<8x32xf32>
    %18 = arith.truncf %16 : vector<8x128xf32> to vector<8x128xbf16>
    %c0_10 = arith.constant 0 : index
    %c0_11 = arith.constant 0 : index
    %19 = vector.load %arg8[%c0_10, %c0_11] : memref<128x32xbf16, #tpu.memory_space<vmem>>, vector<128x32xbf16>
    %cst_12 = arith.constant dense<0.000000e+00> : vector<8x32xf32>
    %20 = tpu.matmul %18, %19, %cst_12 {dimension_numbers = #tpu.dot_dimension_numbers<[1], [0], [0], [1], [0, 0, 1, 1], [], []>} : vector<8x128xbf16>, vector<128x32xbf16>, vector<8x32xf32> -> vector<8x32xf32>
    %21 = arith.addf %17, %20 : vector<8x32xf32>
    %c0_13 = arith.constant 0 : index
    %c0_14 = arith.constant 0 : index
    %22 = vector.load %arg12[%c0_13, %c0_14] : memref<8x32xf32, #tpu.memory_space<vmem>>, vector<8x32xf32>
    tpu.vector_store %arg12[%c0_13, %c0_14], %21 {strides = array<i32>} : memref<8x32xf32, #tpu.memory_space<vmem>>, vector<8x32xf32>,
    %c0_i32_15 = arith.constant 0 : i32
    %23 = arith.cmpi eq, %arg2, %c0_i32_15 : i32
    %24 = arith.extui %23 : i1 to i32
    %c0_i32_16 = arith.constant 0 : i32
    %25 = arith.cmpi ne, %24, %c0_i32_16 : i32
    scf.if %25 {
      %c0_17 = arith.constant 0 : index
      %c0_18 = arith.constant 0 : index
      %26 = vector.load %arg12[%c0_17, %c0_18] : memref<8x32xf32, #tpu.memory_space<vmem>>, vector<8x32xf32>
      %c0_19 = arith.constant 0 : index
      %c0_20 = arith.constant 0 : index
      %27 = vector.load %arg9[%c0_19, %c0_20] : memref<1x32xf32, #tpu.memory_space<vmem>>, vector<1x32xf32>
      %28 = vector.broadcast %27 : vector<1x32xf32> to vector<8x32xf32>
      %29 = arith.addf %26, %28 : vector<8x32xf32>
      %c0_21 = arith.constant 0 : index
      %c0_22 = arith.constant 0 : index
      %c0_23 = arith.constant 0 : index
      %30 = vector.load %arg3[%c0_21, %c0_22, %c0_23] : memref<1x8x32xf32, #tpu.memory_space<vmem>>, vector<1x8x32xf32>
      %31 = vector.shape_cast %30 : vector<1x8x32xf32> to vector<8x32xf32>
      %32 = arith.addf %29, %31 : vector<8x32xf32>
      %c0_24 = arith.constant 0 : index
      %c0_25 = arith.constant 0 : index
      %c0_26 = arith.constant 0 : index
      %33 = vector.load %arg10[%c0_24, %c0_25, %c0_26] : memref<1x8x32xf32, #tpu.memory_space<vmem>>, vector<1x8x32xf32>
      %34 = vector.shape_cast %33 : vector<1x8x32xf32> to vector<8x32xf32>
      %35 = vector.shape_cast %32 : vector<8x32xf32> to vector<1x8x32xf32>
      tpu.vector_store %arg10[%c0_24, %c0_25, %c0_26], %35 {strides = array<i32>} : memref<1x8x32xf32, #tpu.memory_space<vmem>>, vector<1x8x32xf32>,
    } else {
    }
    return
  }
  func.func @transform_0(%arg0: i32, %arg1: i32, %arg2: i32) -> (i32, i32, i32) {
    %c0_i32 = arith.constant 0 : i32
    %c0_i32_0 = arith.constant 0 : i32
    return %arg0, %arg1, %c0_i32 : i32, i32, i32
  }
  func.func @transform_1(%arg0: i32, %arg1: i32, %arg2: i32) -> (i32, i32) {
    %c0_i32 = arith.constant 0 : i32
    %c0_i32_0 = arith.constant 0 : i32
    %c0_i32_1 = arith.constant 0 : i32
    return %c0_i32, %c0_i32_0 : i32, i32
  }
  func.func @transform_2(%arg0: i32, %arg1: i32, %arg2: i32) -> (i32, i32) {
    %c0_i32 = arith.constant 0 : i32
    %c0_i32_0 = arith.constant 0 : i32
    %c0_i32_1 = arith.constant 0 : i32
    return %c0_i32, %c0_i32_0 : i32, i32
  }
  func.func @transform_3(%arg0: i32, %arg1: i32, %arg2: i32) -> (i32, i32) {
    %c0_i32 = arith.constant 0 : i32
    %c0_i32_0 = arith.constant 0 : i32
    return %c0_i32, %arg2 : i32, i32
  }
  func.func @transform_4(%arg0: i32, %arg1: i32, %arg2: i32) -> (i32, i32) {
    %c0_i32 = arith.constant 0 : i32
    %c0_i32_0 = arith.constant 0 : i32
    return %c0_i32, %arg2 : i32, i32
  }
  func.func @transform_5(%arg0: i32, %arg1: i32, %arg2: i32) -> (i32, i32) {
    %c0_i32 = arith.constant 0 : i32
    %c0_i32_0 = arith.constant 0 : i32
    return %arg2, %c0_i32 : i32, i32
  }
  func.func @transform_6(%arg0: i32, %arg1: i32, %arg2: i32) -> (i32, i32) {
    %c0_i32 = arith.constant 0 : i32
    %c0_i32_0 = arith.constant 0 : i32
    %c0_i32_1 = arith.constant 0 : i32
    return %c0_i32, %c0_i32_0 : i32, i32
  }
  func.func @transform_7(%arg0: i32, %arg1: i32, %arg2: i32) -> (i32, i32, i32) {
    %c0_i32 = arith.constant 0 : i32
    %c0_i32_0 = arith.constant 0 : i32
    return %arg0, %arg1, %c0_i32 : i32, i32, i32
  }
}

</mosaic_0001>

<llo_original>
// kernel: transformer_forward.8
$region0: #{transformer_forward.8}
  #allocation0 [shape = 'u32[]', space=smem, size = 0x4, offset = 0x4, fixed_abs, tag = 'smem constant byte address 0x4 - core index']
  #allocation1 [shape = 'u32[144,128]{1,0:T(1,128)}', space=vmem, size = 0x12000, scoped, tag = 'internal scratch']
  #allocation2 [shape = 'bf16[8,32]{1,0:T(8,128)(2,1)}', space=vmem, size = 0x800, scoped, tag = 'scratch operand']
  %s0 = inlined_call_operand.vmem [shape: f32[2,8,32], index: 0, kind: input, shape index: {}]
  %s1 = inlined_call_operand.vmem [shape: f32[1,32], index: 1, kind: input, shape index: {}]
  %s2 = inlined_call_operand.vmem [shape: f32[1,32], index: 2, kind: input, shape index: {}]
  %s3 = inlined_call_operand.vmem [shape: bf16[32,96], index: 3, kind: input, shape index: {}]
  %s4 = inlined_call_operand.vmem [shape: f32[1,96], index: 4, kind: input, shape index: {}]
  %s5 = inlined_call_operand.vmem [shape: bf16[2,8,96], index: 5, kind: output, shape index: {}]
  %s6 = sld [smem:[#allocation0]]
  $region57: #{transformer_forward.8} parent=0
    _
  %s8 = ssub.s32 1, %s6
  %s9 = scalar_select 0, %s8, %s6
  loop: start=0, step=1, limit=4
  $region2: #{transformer_forward.8} parent=0 // loop_pre_header
    _
  $region3: #{transformer_forward.8} parent=0 // loop_header
    %s11 = sphi 0, %s15
    %p12 = scmp.ge.s32.totalorder %s11, 4
    %s18 = sphi 0, %s37
    %s19 = sphi 0, %s33
    %s20 = sphi 0, %s29
    %s21 = sphi 0, %s18
    %s22 = sphi 0, %s19
    %s23 = sphi 0, %s20
    %s24 = sphi 0, %s21
    %s25 = sphi 0, %s22
    %s26 = sphi 0, %s23
    %s42 = sphi 0, %s44
    %s45 = sphi 0, %s42
    %s46 = sphi 0, %s45
    %s62 = sphi 0, %s46
    %s66 = sphi 0, %s66
    %s68 = sphi 0, %s66
    %s69 = sphi 0, %s68
    %s83 = sphi 0, %s69
    %s87 = sphi 0, %s87
    %s89 = sphi 0, %s87
    %s90 = sphi 0, %s89
    %s104 = sphi 0, %s90
    %s110 = sphi 0, %s112
    %s113 = sphi 0, %s110
    %s114 = sphi 0, %s113
    %s130 = sphi 0, %s114
    %s136 = sphi 0, %s138
    %s139 = sphi 0, %s136
    %s140 = sphi 0, %s139
    %s156 = sphi 0, %s140
    %s166 = sphi 0, %s168
    %s169 = sphi 0, %s166
    %s170 = sphi 0, %s169
    %s186 = sphi 0, %s170
  $region4: #{transformer_forward.8} parent=0 // loop_header_branch
    %14 = sbr.rel (%p12) target = $region8
  $region5: #{transformer_forward.8} parent=0 // loop_body
    %s16 = ssub.s32 %s11, 1
    %s17 = ssub.s32 %s11, 2
    %s27 = sadd.s32 1, %s20
    %p28 = scmp.ge.s32.totalorder %s27, 1
    %s29 = scalar_select %p28, 0, %s27
    %s30 = sadd.s32 1, %s19
    %s31 = scalar_select %p28, %s30, %s19
    %p32 = scmp.ge.s32.totalorder %s31, 1
    %s33 = scalar_select %p32, 0, %s31
    %s34 = sadd.s32 1, %s18
    %s35 = scalar_select %p32, %s34, %s18
    %p36 = scmp.ge.s32.totalorder %s35, 2
    %s37 = scalar_select %p36, 0, %s35
    %s38 = ssub.s32 %s18, %s37
    %s39 = ssub.s32 %s19, %s33
    %s40 = sor.u32 %s38, %s39
    %p41 = scmp.eq.s32.totalorder %s40, 0
    %s43 = sadd.s32 %s42, 1
    %s44 = scalar_select %p41, %s42, %s43
    %p47 = pneg %p41
    %p48 = scmp.eq.s32.totalorder %s11, 1
    %p49 = por %p47, %p48
    %p50 = scmp.ne.s32.totalorder %s42, %s45
    %p51 = scmp.eq.s32.totalorder %s11, 0
    %p52 = por %p50, %p51
    %p53 = scmp.ne.s32.totalorder %s42, %s45
    %p54 = scmp.eq.s32.totalorder %s16, 1
    %p55 = por %p53, %p54
    %p56 = scmp.ne.s32.totalorder %s45, %s46
    %p57 = scmp.eq.s32.totalorder %s16, 0
    %p58 = por %p56, %p57
    %p59 = scmp.ne.s32.totalorder %s45, %s46
    %p60 = scmp.eq.s32.totalorder %s17, 1
    %p61 = por %p59, %p60
    %p63 = scmp.ne.s32.totalorder %s46, %s62
    %p64 = scmp.eq.s32.totalorder %s17, 0
    %p65 = por %p63, %p64
    %s67 = sadd.s32 %s66, 1
    %p70 = scmp.eq.s32.totalorder %s11, 1
    %p71 = scmp.ne.s32.totalorder %s66, %s68
    %p72 = scmp.eq.s32.totalorder %s11, 0
    %p73 = por %p71, %p72
    %p74 = scmp.ne.s32.totalorder %s66, %s68
    %p75 = scmp.eq.s32.totalorder %s16, 1
    %p76 = por %p74, %p75
    %p77 = scmp.ne.s32.totalorder %s68, %s69
    %p78 = scmp.eq.s32.totalorder %s16, 0
    %p79 = por %p77, %p78
    %p80 = scmp.ne.s32.totalorder %s68, %s69
    %p81 = scmp.eq.s32.totalorder %s17, 1
    %p82 = por %p80, %p81
    %p84 = scmp.ne.s32.totalorder %s69, %s83
    %p85 = scmp.eq.s32.totalorder %s17, 0
    %p86 = por %p84, %p85
    %s88 = sadd.s32 %s87, 1
    %p91 = scmp.eq.s32.totalorder %s11, 1
    %p92 = scmp.ne.s32.totalorder %s87, %s89
    %p93 = scmp.eq.s32.totalorder %s11, 0
    %p94 = por %p92, %p93
    %p95 = scmp.ne.s32.totalorder %s87, %s89
    %p96 = scmp.eq.s32.totalorder %s16, 1
    %p97 = por %p95, %p96
    %p98 = scmp.ne.s32.totalorder %s89, %s90
    %p99 = scmp.eq.s32.totalorder %s16, 0
    %p100 = por %p98, %p99
    %p101 = scmp.ne.s32.totalorder %s89, %s90
    %p102 = scmp.eq.s32.totalorder %s17, 1
    %p103 = por %p101, %p102
    %p105 = scmp.ne.s32.totalorder %s90, %s104
    %p106 = scmp.eq.s32.totalorder %s17, 0
    %p107 = por %p105, %p106
    %s108 = ssub.s32 %s20, %s29
    %p109 = scmp.eq.s32.totalorder %s108, 0
    %s111 = sadd.s32 %s110, 1
    %s112 = scalar_select %p109, %s110, %s111
    %p115 = pneg %p109
    %p116 = scmp.eq.s32.totalorder %s11, 1
    %p117 = por %p115, %p116
    %p118 = scmp.ne.s32.totalorder %s110, %s113
    %p119 = scmp.eq.s32.totalorder %s11, 0
    %p120 = por %p118, %p119
    %p121 = scmp.ne.s32.totalorder %s110, %s113
    %p122 = scmp.eq.s32.totalorder %s16, 1
    %p123 = por %p121, %p122
    %p124 = scmp.ne.s32.totalorder %s113, %s114
    %p125 = scmp.eq.s32.totalorder %s16, 0
    %p126 = por %p124, %p125
    %p127 = scmp.ne.s32.totalorder %s113, %s114
    %p128 = scmp.eq.s32.totalorder %s17, 1
    %p129 = por %p127, %p128
    %p131 = scmp.ne.s32.totalorder %s114, %s130
    %p132 = scmp.eq.s32.totalorder %s17, 0
    %p133 = por %p131, %p132
    %s134 = ssub.s32 %s20, %s29
    %p135 = scmp.eq.s32.totalorder %s134, 0
    %s137 = sadd.s32 %s136, 1
    %s138 = scalar_select %p135, %s136, %s137
    %p141 = pneg %p135
    %p142 = scmp.eq.s32.totalorder %s11, 1
    %p143 = por %p141, %p142
    %p144 = scmp.ne.s32.totalorder %s136, %s139
    %p145 = scmp.eq.s32.totalorder %s11, 0
    %p146 = por %p144, %p145
    %p147 = scmp.ne.s32.totalorder %s136, %s139
    %p148 = scmp.eq.s32.totalorder %s16, 1
    %p149 = por %p147, %p148
    %p150 = scmp.ne.s32.totalorder %s139, %s140
    %p151 = scmp.eq.s32.totalorder %s16, 0
    %p152 = por %p150, %p151
    %p153 = scmp.ne.s32.totalorder %s139, %s140
    %p154 = scmp.eq.s32.totalorder %s17, 1
    %p155 = por %p153, %p154
    %p157 = scmp.ne.s32.totalorder %s140, %s156
    %p158 = scmp.eq.s32.totalorder %s17, 0
    %p159 = por %p157, %p158
    %s160 = ssub.s32 %s18, %s37
    %s161 = ssub.s32 %s19, %s33
    %s162 = sor.u32 %s160, %s161
    %s163 = ssub.s32 %s20, %s29
    %s164 = sor.u32 %s162, %s163
    %p165 = scmp.eq.s32.totalorder %s164, 0
    %s167 = sadd.s32 %s166, 1
    %s168 = scalar_select %p165, %s166, %s167
    %p171 = pneg %p165
    %p172 = scmp.eq.s32.totalorder %s11, 1
    %p173 = por %p171, %p172
    %p174 = scmp.ne.s32.totalorder %s166, %s169
    %p175 = scmp.eq.s32.totalorder %s11, 0
    %p176 = por %p174, %p175
    %p177 = scmp.ne.s32.totalorder %s166, %s169
    %p178 = scmp.eq.s32.totalorder %s16, 1
    %p179 = por %p177, %p178
    %p180 = scmp.ne.s32.totalorder %s169, %s170
    %p181 = scmp.eq.s32.totalorder %s16, 0
    %p182 = por %p180, %p181
    %p183 = scmp.ne.s32.totalorder %s169, %s170
    %p184 = scmp.eq.s32.totalorder %s17, 1
    %p185 = por %p183, %p184
    %p187 = scmp.ne.s32.totalorder %s170, %s186
    %p188 = scmp.eq.s32.totalorder %s17, 0
    %p189 = por %p187, %p188
    %p190 = scmp.le.s32.totalorder 1, %s11
    %p191 = scmp.lt.s32.totalorder %s11, 3
    %p192 = pnand %p190, %p191
    %p193 = pneg %p192
    // Predicated region
    $region9: #{transformer_forward.8} parent=5 // pred_check
      _
    $region10: #{transformer_forward.8} parent=5 // pred_check_branch
      %195 = sbr.rel (%p192) target = $region12
    $region11: #{transformer_forward.8} parent=5 // pred_region
      %s196 = ssub.s32 %s11, 1
      // Predicated region
      $region13: #{transformer_forward.8} parent=11 // pred_check
        %p197 = pneg %p79
      $region14: #{transformer_forward.8} parent=11 // pred_check_branch
        %199 = sbr.rel (%p197) target = $region16
      $region15: #{transformer_forward.8} parent=11 // pred_region
        _
      $region16: #{transformer_forward.8} parent=11 // pred_fallthru
        _
      // Predicated region
      $region17: #{transformer_forward.8} parent=11 // pred_check
        %p200 = pneg %p100
      $region18: #{transformer_forward.8} parent=11 // pred_check_branch
        %202 = sbr.rel (%p200) target = $region20
      $region19: #{transformer_forward.8} parent=11 // pred_region
        _
      $region20: #{transformer_forward.8} parent=11 // pred_fallthru
        _
      // Predicated region
      $region21: #{transformer_forward.8} parent=11 // pred_check
        %p203 = pneg %p126
      $region22: #{transformer_forward.8} parent=11 // pred_check_branch
        %205 = sbr.rel (%p203) target = $region24
      $region23: #{transformer_forward.8} parent=11 // pred_region
        %p206 = scmp.lt.s32.totalorder %s23, 0
        %s207 = scalar_select %p206, %s23, 0
        %s208 = smul.addr %s207, 4
        %s209 = scalar_lea.vmem %s3, %s208
      $region24: #{transformer_forward.8} parent=11 // pred_fallthru
        _
      // Predicated region
      $region25: #{transformer_forward.8} parent=11 // pred_check
        %p210 = pneg %p152
      $region26: #{transformer_forward.8} parent=11 // pred_check_branch
        %212 = sbr.rel (%p210) target = $region28
      $region27: #{transformer_forward.8} parent=11 // pred_region
        %p213 = scmp.lt.s32.totalorder %s23, 0
        %s214 = scalar_select %p213, %s23, 0
        %s215 = scalar_lea.vmem %s4, %s214
      $region28: #{transformer_forward.8} parent=11 // pred_fallthru
        _
    $region12: #{transformer_forward.8} parent=5 // pred_fallthru
      _
    %p216 = scmp.lt.s32.totalorder %s11, 2
    // Predicated region
    $region29: #{transformer_forward.8} parent=5 // pred_check
      %p217 = pneg %p216
    $region30: #{transformer_forward.8} parent=5 // pred_check_branch
      %219 = sbr.rel (%p217) target = $region32
    $region31: #{transformer_forward.8} parent=5 // pred_region
      // Predicated region
      $region33: #{transformer_forward.8} parent=31 // pred_check
        %p220 = pneg %p52
      $region34: #{transformer_forward.8} parent=31 // pred_check_branch
        %222 = sbr.rel (%p220) target = $region36
      $region35: #{transformer_forward.8} parent=31 // pred_region
        %p223 = scmp.lt.s32.totalorder %s18, 1
        %s224 = scalar_select %p223, %s18, 1
        %p225 = scmp.lt.s32.totalorder %s19, 0
        %s226 = scalar_select %p225, %s19, 0
        %s227 = sadd.s32 %s226, %s224
        %s228 = smul.addr %s227, 8
        %s229 = scalar_lea.vmem %s0, %s228
      $region36: #{transformer_forward.8} parent=31 // pred_fallthru
        _
    $region32: #{transformer_forward.8} parent=5 // pred_fallthru
      _
    %p230 = scmp.le.s32.totalorder 1, %s11
    %p231 = scmp.lt.s32.totalorder %s11, 3
    %p232 = pnand %p230, %p231
    %p233 = pneg %p232
    // Predicated region
    $region37: #{transformer_forward.8} parent=5 // pred_check
      _
    $region38: #{transformer_forward.8} parent=5 // pred_check_branch
      %235 = sbr.rel (%p232) target = $region40
    $region39: #{transformer_forward.8} parent=5 // pred_region
      %s236 = ssub.s32 %s11, 1
      %p237 = scmp.lt.s32.totalorder %s21, 1
      %s238 = scalar_select %p237, %s21, 1
      %p239 = scmp.lt.s32.totalorder %s22, 0
      %s240 = scalar_select %p239, %s22, 0
      %s241 = sadd.s32 %s240, %s238
      %s242 = smul.addr %s241, 8
      %s243 = scalar_lea.vmem %s0, %s242
      %p244 = pneg %p58
      %p245 = pneg %p55
      %p246 = pneg %p79
      %p247 = pneg %p76
      %p248 = pneg %p100
      %p249 = pneg %p97
      %p250 = scmp.lt.s32.totalorder %s23, 0
      %s251 = scalar_select %p250, %s23, 0
      %s252 = smul.addr %s251, 4
      %s253 = scalar_lea.vmem %s3, %s252
      %p254 = pneg %p126
      %p255 = pneg %p123
      %p256 = scmp.lt.s32.totalorder %s23, 0
      %s257 = scalar_select %p256, %s23, 0
      %s258 = scalar_lea.vmem %s4, %s257
      %p259 = pneg %p152
      %p260 = pneg %p149
      %p261 = pneg %p182
      %p262 = pneg %p179
      %p263 = scmp.lt.s32.totalorder %s21, 1
      %s264 = scalar_select %p263, %s21, 1
      %p265 = scmp.lt.s32.totalorder %s22, 0
      %s266 = scalar_select %p265, %s22, 0
      %p267 = scmp.lt.s32.totalorder %s23, 0
      %s268 = scalar_select %p267, %s23, 0
      %s269 = sadd.s32 %s268, %s266
      %s270 = sadd.s32 %s269, %s264
      %s271 = smul.addr %s270, 4
      %s272 = scalar_lea.vmem %s5, %s271
      %p273 = scmp.lt.s32.totalorder %s21, 1
      %s274 = scalar_select %p273, %s21, 1
      %p275 = scmp.lt.s32.totalorder %s22, 0
      %s276 = scalar_select %p275, %s22, 0
      %s277 = sadd.s32 %s276, %s274
      %s278 = smul.addr %s277, 8
      %s279 = scalar_lea.vmem %s0, %s278
      %p280 = scmp.lt.s32.totalorder %s23, 0
      %s281 = scalar_select %p280, %s23, 0
      %s282 = smul.addr %s281, 4
      %s283 = scalar_lea.vmem %s3, %s282
      %p284 = scmp.lt.s32.totalorder %s23, 0
      %s285 = scalar_select %p284, %s23, 0
      %s286 = scalar_lea.vmem %s4, %s285
      %p287 = scmp.lt.s32.totalorder %s21, 1
      %s288 = scalar_select %p287, %s21, 1
      %p289 = scmp.lt.s32.totalorder %s22, 0
      %s290 = scalar_select %p289, %s22, 0
      %p291 = scmp.lt.s32.totalorder %s23, 0
      %s292 = scalar_select %p291, %s23, 0
      %s293 = sadd.s32 %s292, %s290
      %s294 = sadd.s32 %s293, %s288
      %s295 = smul.addr %s294, 4
      %s296 = scalar_lea.vmem %s5, %s295
      %p298 = scmp.eq.s32.totalorder %s23, 0
      // Predicated region
      $region41: #{transformer_forward.8} parent=39 // pred_check
        %p299 = pneg %p298
      $region42: #{transformer_forward.8} parent=39 // pred_check_branch
        %301 = sbr.rel (%p299) target = $region44
      $region43: #{transformer_forward.8} parent=39 // pred_region
        %v302 = vld [vmem:[%s279] sm:$0xff]
        %vm303 = vcmask 261120
        %v304 = vsel %vm303, %v302, 0.0
        %305 = vadd.xlane.f32.xlu0 %v304
        %v306 = vpop.xlane.xlu0 %305
        %v307 = vrcp.pop 32.0
        %v308 = vmul.f32 %v306, %v307
        %v309 = vsub.f32 %v302, %v308
        %v310 = vmul.f32 %v309, %v309
        %v311 = vsel %vm303, %v310, 0.0
        %312 = vadd.xlane.f32.xlu0 %v311
        %v313 = vpop.xlane.xlu0 %312
        %v314 = vmul.f32 %v313, %v307
        %v315 = vadd.f32 %v314, 1e-05
        %v316 = vrsqrt.pop %v315
        %v317 = vmul.f32 %v309, %v316
        %v318 = vld [vmem:[%s1] sm:$0x1]
        %v320 = vlaneseq
        %v321 = vshrl.u32 %v320, 7
        %v322 = vsub.s32 0, %v321
        %v323 = vrot.slane %v318, %v322
        %v325 = vmul.f32 %v317, %v323
        %v326 = vld [vmem:[%s2] sm:$0x1]
        %v328 = vlaneseq
        %v329 = vshrl.u32 %v328, 7
        %v330 = vsub.s32 0, %v329
        %v331 = vrot.slane %v326, %v330
        %v333 = vadd.f32 %v325, %v331
        %v334 = vpack.c.bf16 %v333, %v333
        %vm335 = vcmask 257024
        %336 = vst.msk [vmem:[#allocation2] sm:$0xf] %vm335, %v334
      $region44: #{transformer_forward.8} parent=39 // pred_fallthru
        _
      %v337 = vld [vmem:[#allocation2] sm:$0xf]
      %v338 = vld [vmem:[%s283] sm:$0xf]
      %v339 = vld [vmem:[%s283 + $0x4] sm:$0xf]
      %v340 = vld [vmem:[%s283 + $0x8] sm:$0xf]
      %v341 = vld [vmem:[%s283 + $0xc] sm:$0xf]
      %v342 = vld [vmem:[%s286] sm:$0x1]
      %v344 = vlaneseq
      %v345 = vshrl.u32 %v344, 7
      %v346 = vsub.s32 0, %v345
      %v347 = vrot.slane %v342, %v346
      %v353 = vunpack.c.l.b16 %v338
      %v354 = vunpack.c.l.b16 %v339
      %v355 = vunpack.c.l.b16 %v340
      %v356 = vunpack.c.l.b16 %v341
      %v357 = vpack.c.b16 %v354, %v353
      %v358 = vpack.c.b16 %v356, %v355
      %vm361 = vcmask 261120
      %v363 = vsel %vm361, %v337, 0
      %365 = vmatprep.subr.bf16.mxu0 0
      %366 = vmatpush1.bf16.msra.mxu0 %v357
      %367 = vmatprep.subr.bf16.mxu0 0
      %368 = vmatpush1.bf16.msra.mxu0 %v358
      %369 = vmatprep.subr.bf16.mxu0 0
      %370 = vmatpush1.bf16.msra.mxu0 0
      %371 = vmatprep.subr.bf16.mxu0 0
      %372 = vmatpush1.bf16.msra.mxu0 0
      %373 = vmatprep.subr.bf16.mxu0 0
      %374 = vmatpush1.bf16.msra.mxu0 0
      %375 = vmatprep.subr.bf16.mxu0 0
      %376 = vmatpush1.bf16.msra.mxu0 0
      %377 = vmatprep.subr.bf16.mxu0 0
      %378 = vmatpush1.bf16.msra.mxu0 0
      %379 = vmatprep.subr.bf16.mxu0 0
      %380 = vmatpush1.bf16.msra.mxu0 0
      %381 = vmatprep.subr.bf16.mxu0 0
      %382 = vmatpush1.bf16.msra.mxu0 0
      %383 = vmatprep.subr.bf16.mxu0 0
      %384 = vmatpush1.bf16.msra.mxu0 0
      %385 = vmatprep.subr.bf16.mxu0 0
      %386 = vmatpush1.bf16.msra.mxu0 0
      %387 = vmatprep.subr.bf16.mxu0 0
      %388 = vmatpush1.bf16.msra.mxu0 0
      %389 = vmatprep.subr.bf16.mxu0 0
      %390 = vmatpush1.bf16.msra.mxu0 0
      %391 = vmatprep.subr.bf16.mxu0 0
      %392 = vmatpush1.bf16.msra.mxu0 0
      %393 = vmatprep.subr.bf16.mxu0 0
      %394 = vmatpush1.bf16.msra.mxu0 0
      %395 = vmatprep.subr.bf16.mxu0 0
      %396 = vmatpush1.bf16.msra.mxu0 0
      %397 = vmatprep.mubr.bf16.mxu0 0
      %398 = vmatmul.mubr.bf16.gmra.mrb[0].mxu0 %v363
      %v399 = vpop.f32.mrb[0].mxu0
      %v400 = vadd.f32 %v347, %v399
      %v401 = vpop.f32.mrb[0].mxu0
      %v402 = vpop.f32.mrb[0].mxu0
      %v403 = vpop.f32.mrb[0].mxu0
      %404 = vdwg.mxu0
      %v405 = vpack.c.bf16 %v400, %v400
      %vm406 = vcmask 781312
      %407 = vst.msk [vmem:[%s296] sm:$0xf] %vm406, %v405
      %p408 = scmp.lt.s32.totalorder %s21, 1
      %s409 = scalar_select %p408, %s21, 1
      %p410 = scmp.lt.s32.totalorder %s22, 0
      %s411 = scalar_select %p410, %s22, 0
      %p412 = scmp.lt.s32.totalorder %s23, 0
      %s413 = scalar_select %p412, %s23, 0
      %s414 = sadd.s32 %s413, %s411
      %s415 = sadd.s32 %s414, %s409
      %s416 = smul.addr %s415, 4
      %s417 = scalar_lea.vmem %s5, %s416
      // Predicated region
      $region45: #{transformer_forward.8} parent=39 // pred_check
        %p418 = pneg %p179
      $region46: #{transformer_forward.8} parent=39 // pred_check_branch
        %420 = sbr.rel (%p418) target = $region48
      $region47: #{transformer_forward.8} parent=39 // pred_region
        _
      $region48: #{transformer_forward.8} parent=39 // pred_fallthru
        _
    $region40: #{transformer_forward.8} parent=5 // pred_fallthru
      _
    %p421 = scmp.le.s32.totalorder 2, %s11
    // Predicated region
    $region49: #{transformer_forward.8} parent=5 // pred_check
      %p422 = pneg %p421
    $region50: #{transformer_forward.8} parent=5 // pred_check_branch
      %424 = sbr.rel (%p422) target = $region52
    $region51: #{transformer_forward.8} parent=5 // pred_region
      %s425 = ssub.s32 %s11, 2
      // Predicated region
      $region53: #{transformer_forward.8} parent=51 // pred_check
        %p426 = pneg %p185
      $region54: #{transformer_forward.8} parent=51 // pred_check_branch
        %428 = sbr.rel (%p426) target = $region56
      $region55: #{transformer_forward.8} parent=51 // pred_region
        %p429 = scmp.lt.s32.totalorder %s24, 1
        %s430 = scalar_select %p429, %s24, 1
        %p431 = scmp.lt.s32.totalorder %s25, 0
        %s432 = scalar_select %p431, %s25, 0
        %p433 = scmp.lt.s32.totalorder %s26, 0
        %s434 = scalar_select %p433, %s26, 0
        %s435 = sadd.s32 %s434, %s432
        %s436 = sadd.s32 %s435, %s430
        %s437 = smul.addr %s436, 4
        %s438 = scalar_lea.vmem %s5, %s437
      $region56: #{transformer_forward.8} parent=51 // pred_fallthru
        _
    $region52: #{transformer_forward.8} parent=5 // pred_fallthru
      _
  $region6: #{transformer_forward.8} parent=0 // loop_footer
    %s15 = sadd.s32 1, %s11
  $region7: #{transformer_forward.8} parent=0 // loop_footer_branch
    %10 = sbr.rel target = $region3
  $region8: #{transformer_forward.8} parent=0 // loop_exit
    _

// kernel: transformer_forward.9
$region0: #{transformer_forward.9}
  #allocation0 [shape = 'u32[]', space=smem, size = 0x4, offset = 0x4, fixed_abs, tag = 'smem constant byte address 0x4 - core index']
  #allocation1 [shape = 'u32[144,128]{1,0:T(1,128)}', space=vmem, size = 0x12000, scoped, tag = 'internal scratch']
  %s0 = inlined_call_operand.vmem [shape: bf16[2,4,8,8], index: 0, kind: input, shape index: {}]
  %s1 = inlined_call_operand.vmem [shape: bf16[2,4,8,8], index: 1, kind: input, shape index: {}]
  %s2 = inlined_call_operand.vmem [shape: bf16[2,4,8,8], index: 2, kind: input, shape index: {}]
  %s3 = inlined_call_operand.vmem [shape: f32[2,8,8], index: 3, kind: input, shape index: {}]
  %s4 = inlined_call_operand.vmem [shape: bf16[2,4,8,8], index: 4, kind: output, shape index: {}]
  %s5 = sld [smem:[#allocation0]]
  $region49: #{transformer_forward.9} parent=0
    _
  %s7 = ssub.s32 1, %s5
  %s8 = scalar_select 0, %s7, %s5
  loop: start=0, step=1, limit=10
  $region2: #{transformer_forward.9} parent=0 // loop_pre_header
    _
  $region3: #{transformer_forward.9} parent=0 // loop_header
    %s10 = sphi 0, %s14
    %p11 = scmp.ge.s32.totalorder %s10, 10
    %s17 = sphi 0, %s29
    %s18 = sphi 0, %s25
    %s19 = sphi 0, %s17
    %s20 = sphi 0, %s18
    %s21 = sphi 0, %s19
    %s22 = sphi 0, %s20
    %s34 = sphi 0, %s36
    %s37 = sphi 0, %s34
    %s38 = sphi 0, %s37
    %s54 = sphi 0, %s38
    %s62 = sphi 0, %s64
    %s65 = sphi 0, %s62
    %s66 = sphi 0, %s65
    %s82 = sphi 0, %s66
    %s90 = sphi 0, %s92
    %s93 = sphi 0, %s90
    %s94 = sphi 0, %s93
    %s110 = sphi 0, %s94
    %s116 = sphi 0, %s118
    %s119 = sphi 0, %s116
    %s120 = sphi 0, %s119
    %s136 = sphi 0, %s120
    %s144 = sphi 0, %s146
    %s147 = sphi 0, %s144
    %s148 = sphi 0, %s147
    %s164 = sphi 0, %s148
  $region4: #{transformer_forward.9} parent=0 // loop_header_branch
    %13 = sbr.rel (%p11) target = $region8
  $region5: #{transformer_forward.9} parent=0 // loop_body
    %s15 = ssub.s32 %s10, 1
    %s16 = ssub.s32 %s10, 2
    %s23 = sadd.s32 1, %s18
    %p24 = scmp.ge.s32.totalorder %s23, 4
    %s25 = scalar_select %p24, 0, %s23
    %s26 = sadd.s32 1, %s17
    %s27 = scalar_select %p24, %s26, %s17
    %p28 = scmp.ge.s32.totalorder %s27, 2
    %s29 = scalar_select %p28, 0, %s27
    %s30 = ssub.s32 %s17, %s29
    %s31 = ssub.s32 %s18, %s25
    %s32 = sor.u32 %s30, %s31
    %p33 = scmp.eq.s32.totalorder %s32, 0
    %s35 = sadd.s32 %s34, 1
    %s36 = scalar_select %p33, %s34, %s35
    %p39 = pneg %p33
    %p40 = scmp.eq.s32.totalorder %s10, 7
    %p41 = por %p39, %p40
    %p42 = scmp.ne.s32.totalorder %s34, %s37
    %p43 = scmp.eq.s32.totalorder %s10, 0
    %p44 = por %p42, %p43
    %p45 = scmp.ne.s32.totalorder %s34, %s37
    %p46 = scmp.eq.s32.totalorder %s15, 7
    %p47 = por %p45, %p46
    %p48 = scmp.ne.s32.totalorder %s37, %s38
    %p49 = scmp.eq.s32.totalorder %s15, 0
    %p50 = por %p48, %p49
    %p51 = scmp.ne.s32.totalorder %s37, %s38
    %p52 = scmp.eq.s32.totalorder %s16, 7
    %p53 = por %p51, %p52
    %p55 = scmp.ne.s32.totalorder %s38, %s54
    %p56 = scmp.eq.s32.totalorder %s16, 0
    %p57 = por %p55, %p56
    %s58 = ssub.s32 %s17, %s29
    %s59 = ssub.s32 %s18, %s25
    %s60 = sor.u32 %s58, %s59
    %p61 = scmp.eq.s32.totalorder %s60, 0
    %s63 = sadd.s32 %s62, 1
    %s64 = scalar_select %p61, %s62, %s63
    %p67 = pneg %p61
    %p68 = scmp.eq.s32.totalorder %s10, 7
    %p69 = por %p67, %p68
    %p70 = scmp.ne.s32.totalorder %s62, %s65
    %p71 = scmp.eq.s32.totalorder %s10, 0
    %p72 = por %p70, %p71
    %p73 = scmp.ne.s32.totalorder %s62, %s65
    %p74 = scmp.eq.s32.totalorder %s15, 7
    %p75 = por %p73, %p74
    %p76 = scmp.ne.s32.totalorder %s65, %s66
    %p77 = scmp.eq.s32.totalorder %s15, 0
    %p78 = por %p76, %p77
    %p79 = scmp.ne.s32.totalorder %s65, %s66
    %p80 = scmp.eq.s32.totalorder %s16, 7
    %p81 = por %p79, %p80
    %p83 = scmp.ne.s32.totalorder %s66, %s82
    %p84 = scmp.eq.s32.totalorder %s16, 0
    %p85 = por %p83, %p84
    %s86 = ssub.s32 %s17, %s29
    %s87 = ssub.s32 %s18, %s25
    %s88 = sor.u32 %s86, %s87
    %p89 = scmp.eq.s32.totalorder %s88, 0
    %s91 = sadd.s32 %s90, 1
    %s92 = scalar_select %p89, %s90, %s91
    %p95 = pneg %p89
    %p96 = scmp.eq.s32.totalorder %s10, 7
    %p97 = por %p95, %p96
    %p98 = scmp.ne.s32.totalorder %s90, %s93
    %p99 = scmp.eq.s32.totalorder %s10, 0
    %p100 = por %p98, %p99
    %p101 = scmp.ne.s32.totalorder %s90, %s93
    %p102 = scmp.eq.s32.totalorder %s15, 7
    %p103 = por %p101, %p102
    %p104 = scmp.ne.s32.totalorder %s93, %s94
    %p105 = scmp.eq.s32.totalorder %s15, 0
    %p106 = por %p104, %p105
    %p107 = scmp.ne.s32.totalorder %s93, %s94
    %p108 = scmp.eq.s32.totalorder %s16, 7
    %p109 = por %p107, %p108
    %p111 = scmp.ne.s32.totalorder %s94, %s110
    %p112 = scmp.eq.s32.totalorder %s16, 0
    %p113 = por %p111, %p112
    %s114 = ssub.s32 %s17, %s29
    %p115 = scmp.eq.s32.totalorder %s114, 0
    %s117 = sadd.s32 %s116, 1
    %s118 = scalar_select %p115, %s116, %s117
    %p121 = pneg %p115
    %p122 = scmp.eq.s32.totalorder %s10, 7
    %p123 = por %p121, %p122
    %p124 = scmp.ne.s32.totalorder %s116, %s119
    %p125 = scmp.eq.s32.totalorder %s10, 0
    %p126 = por %p124, %p125
    %p127 = scmp.ne.s32.totalorder %s116, %s119
    %p128 = scmp.eq.s32.totalorder %s15, 7
    %p129 = por %p127, %p128
    %p130 = scmp.ne.s32.totalorder %s119, %s120
    %p131 = scmp.eq.s32.totalorder %s15, 0
    %p132 = por %p130, %p131
    %p133 = scmp.ne.s32.totalorder %s119, %s120
    %p134 = scmp.eq.s32.totalorder %s16, 7
    %p135 = por %p133, %p134
    %p137 = scmp.ne.s32.totalorder %s120, %s136
    %p138 = scmp.eq.s32.totalorder %s16, 0
    %p139 = por %p137, %p138
    %s140 = ssub.s32 %s17, %s29
    %s141 = ssub.s32 %s18, %s25
    %s142 = sor.u32 %s140, %s141
    %p143 = scmp.eq.s32.totalorder %s142, 0
    %s145 = sadd.s32 %s144, 1
    %s146 = scalar_select %p143, %s144, %s145
    %p149 = pneg %p143
    %p150 = scmp.eq.s32.totalorder %s10, 7
    %p151 = por %p149, %p150
    %p152 = scmp.ne.s32.totalorder %s144, %s147
    %p153 = scmp.eq.s32.totalorder %s10, 0
    %p154 = por %p152, %p153
    %p155 = scmp.ne.s32.totalorder %s144, %s147
    %p156 = scmp.eq.s32.totalorder %s15, 7
    %p157 = por %p155, %p156
    %p158 = scmp.ne.s32.totalorder %s147, %s148
    %p159 = scmp.eq.s32.totalorder %s15, 0
    %p160 = por %p158, %p159
    %p161 = scmp.ne.s32.totalorder %s147, %s148
    %p162 = scmp.eq.s32.totalorder %s16, 7
    %p163 = por %p161, %p162
    %p165 = scmp.ne.s32.totalorder %s148, %s164
    %p166 = scmp.eq.s32.totalorder %s16, 0
    %p167 = por %p165, %p166
    %p168 = scmp.le.s32.totalorder 1, %s10
    %p169 = scmp.lt.s32.totalorder %s10, 9
    %p170 = pnand %p168, %p169
    %p171 = pneg %p170
    // Predicated region
    $region9: #{transformer_forward.9} parent=5 // pred_check
      _
    $region10: #{transformer_forward.9} parent=5 // pred_check_branch
      %173 = sbr.rel (%p170) target = $region12
    $region11: #{transformer_forward.9} parent=5 // pred_region
      %s174 = ssub.s32 %s10, 1
    $region12: #{transformer_forward.9} parent=5 // pred_fallthru
      _
    %p175 = scmp.lt.s32.totalorder %s10, 8
    // Predicated region
    $region13: #{transformer_forward.9} parent=5 // pred_check
      %p176 = pneg %p175
    $region14: #{transformer_forward.9} parent=5 // pred_check_branch
      %178 = sbr.rel (%p176) target = $region16
    $region15: #{transformer_forward.9} parent=5 // pred_region
      // Predicated region
      $region17: #{transformer_forward.9} parent=15 // pred_check
        %p179 = pneg %p44
      $region18: #{transformer_forward.9} parent=15 // pred_check_branch
        %181 = sbr.rel (%p179) target = $region20
      $region19: #{transformer_forward.9} parent=15 // pred_region
        %p182 = scmp.lt.s32.totalorder %s17, 1
        %s183 = scalar_select %p182, %s17, 1
        %p184 = scmp.lt.s32.totalorder %s18, 3
        %s185 = scalar_select %p184, %s18, 3
        %s186 = smul.addr %s183, 4
        %s187 = sadd.s32 %s185, %s186
        %s188 = smul.addr %s187, 4
        %s189 = scalar_lea.vmem %s0, %s188
      $region20: #{transformer_forward.9} parent=15 // pred_fallthru
        _
      // Predicated region
      $region21: #{transformer_forward.9} parent=15 // pred_check
        %p190 = pneg %p72
      $region22: #{transformer_forward.9} parent=15 // pred_check_branch
        %192 = sbr.rel (%p190) target = $region24
      $region23: #{transformer_forward.9} parent=15 // pred_region
        %p193 = scmp.lt.s32.totalorder %s17, 1
        %s194 = scalar_select %p193, %s17, 1
        %p195 = scmp.lt.s32.totalorder %s18, 3
        %s196 = scalar_select %p195, %s18, 3
        %s197 = smul.addr %s194, 4
        %s198 = sadd.s32 %s196, %s197
        %s199 = smul.addr %s198, 4
        %s200 = scalar_lea.vmem %s1, %s199
      $region24: #{transformer_forward.9} parent=15 // pred_fallthru
        _
      // Predicated region
      $region25: #{transformer_forward.9} parent=15 // pred_check
        %p201 = pneg %p100
      $region26: #{transformer_forward.9} parent=15 // pred_check_branch
        %203 = sbr.rel (%p201) target = $region28
      $region27: #{transformer_forward.9} parent=15 // pred_region
        %p204 = scmp.lt.s32.totalorder %s17, 1
        %s205 = scalar_select %p204, %s17, 1
        %p206 = scmp.lt.s32.totalorder %s18, 3
        %s207 = scalar_select %p206, %s18, 3
        %s208 = smul.addr %s205, 4
        %s209 = sadd.s32 %s207, %s208
        %s210 = smul.addr %s209, 4
        %s211 = scalar_lea.vmem %s2, %s210
      $region28: #{transformer_forward.9} parent=15 // pred_fallthru
        _
      // Predicated region
      $region29: #{transformer_forward.9} parent=15 // pred_check
        %p212 = pneg %p126
      $region30: #{transformer_forward.9} parent=15 // pred_check_branch
        %214 = sbr.rel (%p212) target = $region32
      $region31: #{transformer_forward.9} parent=15 // pred_region
        %p215 = scmp.lt.s32.totalorder %s17, 1
        %s216 = scalar_select %p215, %s17, 1
        %s217 = smul.addr %s216, 8
        %s218 = scalar_lea.vmem %s3, %s217
      $region32: #{transformer_forward.9} parent=15 // pred_fallthru
        _
    $region16: #{transformer_forward.9} parent=5 // pred_fallthru
      _
    %p219 = scmp.le.s32.totalorder 1, %s10
    %p220 = scmp.lt.s32.totalorder %s10, 9
    %p221 = pnand %p219, %p220
    %p222 = pneg %p221
    // Predicated region
    $region33: #{transformer_forward.9} parent=5 // pred_check
      _
    $region34: #{transformer_forward.9} parent=5 // pred_check_branch
      %224 = sbr.rel (%p221) target = $region36
    $region35: #{transformer_forward.9} parent=5 // pred_region
      %s225 = ssub.s32 %s10, 1
      %p226 = scmp.lt.s32.totalorder %s19, 1
      %s227 = scalar_select %p226, %s19, 1
      %p228 = scmp.lt.s32.totalorder %s20, 3
      %s229 = scalar_select %p228, %s20, 3
      %s230 = smul.addr %s227, 4
      %s231 = sadd.s32 %s229, %s230
      %s232 = smul.addr %s231, 4
      %s233 = scalar_lea.vmem %s0, %s232
      %p234 = pneg %p50
      %p235 = pneg %p47
      %p236 = scmp.lt.s32.totalorder %s19, 1
      %s237 = scalar_select %p236, %s19, 1
      %p238 = scmp.lt.s32.totalorder %s20, 3
      %s239 = scalar_select %p238, %s20, 3
      %s240 = smul.addr %s237, 4
      %s241 = sadd.s32 %s239, %s240
      %s242 = smul.addr %s241, 4
      %s243 = scalar_lea.vmem %s1, %s242
      %p244 = pneg %p78
      %p245 = pneg %p75
      %p246 = scmp.lt.s32.totalorder %s19, 1
      %s247 = scalar_select %p246, %s19, 1
      %p248 = scmp.lt.s32.totalorder %s20, 3
      %s249 = scalar_select %p248, %s20, 3
      %s250 = smul.addr %s247, 4
      %s251 = sadd.s32 %s249, %s250
      %s252 = smul.addr %s251, 4
      %s253 = scalar_lea.vmem %s2, %s252
      %p254 = pneg %p106
      %p255 = pneg %p103
      %p256 = scmp.lt.s32.totalorder %s19, 1
      %s257 = scalar_select %p256, %s19, 1
      %s258 = smul.addr %s257, 8
      %s259 = scalar_lea.vmem %s3, %s258
      %p260 = pneg %p132
      %p261 = pneg %p129
      %p262 = pneg %p160
      %p263 = pneg %p157
      %p264 = scmp.lt.s32.totalorder %s19, 1
      %s265 = scalar_select %p264, %s19, 1
      %p266 = scmp.lt.s32.totalorder %s20, 3
      %s267 = scalar_select %p266, %s20, 3
      %s268 = smul.addr %s265, 4
      %s269 = sadd.s32 %s267, %s268
      %s270 = smul.addr %s269, 4
      %s271 = scalar_lea.vmem %s4, %s270
      %p272 = scmp.lt.s32.totalorder %s19, 1
      %s273 = scalar_select %p272, %s19, 1
      %p274 = scmp.lt.s32.totalorder %s20, 3
      %s275 = scalar_select %p274, %s20, 3
      %s276 = smul.addr %s273, 4
      %s277 = sadd.s32 %s275, %s276
      %s278 = smul.addr %s277, 4
      %s279 = scalar_lea.vmem %s0, %s278
      %p280 = scmp.lt.s32.totalorder %s19, 1
      %s281 = scalar_select %p280, %s19, 1
      %p282 = scmp.lt.s32.totalorder %s20, 3
      %s283 = scalar_select %p282, %s20, 3
      %s284 = smul.addr %s281, 4
      %s285 = sadd.s32 %s283, %s284
      %s286 = smul.addr %s285, 4
      %s287 = scalar_lea.vmem %s1, %s286
      %p288 = scmp.lt.s32.totalorder %s19, 1
      %s289 = scalar_select %p288, %s19, 1
      %p290 = scmp.lt.s32.totalorder %s20, 3
      %s291 = scalar_select %p290, %s20, 3
      %s292 = smul.addr %s289, 4
      %s293 = sadd.s32 %s291, %s292
      %s294 = smul.addr %s293, 4
      %s295 = scalar_lea.vmem %s2, %s294
      %p296 = scmp.lt.s32.totalorder %s19, 1
      %s297 = scalar_select %p296, %s19, 1
      %s298 = smul.addr %s297, 8
      %s299 = scalar_lea.vmem %s3, %s298
      %p300 = scmp.lt.s32.totalorder %s19, 1
      %s301 = scalar_select %p300, %s19, 1
      %p302 = scmp.lt.s32.totalorder %s20, 3
      %s303 = scalar_select %p302, %s20, 3
      %s304 = smul.addr %s301, 4
      %s305 = sadd.s32 %s303, %s304
      %s306 = smul.addr %s305, 4
      %s307 = scalar_lea.vmem %s4, %s306
      %v309 = vld [vmem:[%s279] sm:$0xf]
      %v310 = vld [vmem:[%s287] sm:$0xf]
      %v311 = vld [vmem:[%s295] sm:$0xf]
      %vm312 = vcmask 64512
      %v314 = vsel %vm312, %v309, 0
      %v317 = vsel %vm312, %v310, 0
      %319 = vmatprep.subr.bf16.mxu0 0
      %320 = vmatpush1.bf16.xpose.msra.mxu0 %v317
      %321 = vmatprep.subr.bf16.mxu0 0
      %322 = vmatpush1.bf16.xpose.msra.mxu0 0
      %323 = vmatprep.subr.bf16.mxu0 0
      %324 = vmatpush1.bf16.xpose.msra.mxu0 0
      %325 = vmatprep.subr.bf16.mxu0 0
      %326 = vmatpush1.bf16.xpose.msra.mxu0 0
      %327 = vmatprep.subr.bf16.mxu0 0
      %328 = vmatpush1.bf16.xpose.msra.mxu0 0
      %329 = vmatprep.subr.bf16.mxu0 0
      %330 = vmatpush1.bf16.xpose.msra.mxu0 0
      %331 = vmatprep.subr.bf16.mxu0 0
      %332 = vmatpush1.bf16.xpose.msra.mxu0 0
      %333 = vmatprep.subr.bf16.mxu0 0
      %334 = vmatpush1.bf16.xpose.msra.mxu0 0
      %335 = vmatprep.subr.bf16.mxu0 0
      %336 = vmatpush1.bf16.xpose.msra.mxu0 0
      %337 = vmatprep.subr.bf16.mxu0 0
      %338 = vmatpush1.bf16.xpose.msra.mxu0 0
      %339 = vmatprep.subr.bf16.mxu0 0
      %340 = vmatpush1.bf16.xpose.msra.mxu0 0
      %341 = vmatprep.subr.bf16.mxu0 0
      %342 = vmatpush1.bf16.xpose.msra.mxu0 0
      %343 = vmatprep.subr.bf16.mxu0 0
      %344 = vmatpush1.bf16.xpose.msra.mxu0 0
      %345 = vmatprep.subr.bf16.mxu0 0
      %346 = vmatpush1.bf16.xpose.msra.mxu0 0
      %347 = vmatprep.subr.bf16.mxu0 0
      %348 = vmatpush1.bf16.xpose.msra.mxu0 0
      %349 = vmatprep.subr.bf16.mxu0 0
      %350 = vmatpush1.bf16.xpose.msra.mxu0 0
      %351 = vmatprep.mubr.bf16.mxu0 0
      %352 = vmatmul.mubr.bf16.gmra.mrb[0].mxu0 %v314
      %v353 = vpop.f32.mrb[0].mxu0
      %v354 = vadd.f32 0.0, %v353
      %v355 = vpop.f32.mrb[0].mxu0
      %v356 = vpop.f32.mrb[0].mxu0
      %v357 = vpop.f32.mrb[0].mxu0
      %358 = vdwg.mxu0
      %v359 = vmul.f32 %v354, 0.35355338
      %v360 = vld [vmem:[%s299] sm:$0xff]
      %v361 = vadd.f32 %v359, %v360
      %v362 = vsel %vm312, %v361, -inf
      %363 = vmax.xlane.f32.xlu0 %v362
      %v364 = vpop.xlane.xlu0 %363
      %v365 = vsub.f32 %v361, %v364
      %v366 = vmul.f32 %v365, 1.442695
      %v367 = vpow.pop %v366
      %v368 = vsel %vm312, %v367, 0.0
      %369 = vadd.xlane.f32.xlu0 %v368
      %v370 = vpop.xlane.xlu0 %369
      %v371 = vrcp.pop %v370
      %v372 = vmul.f32 %v367, %v371
      %v373 = vpack.c.bf16 %v372, %v372
      %v375 = vsel %vm312, %v373, 0
      %vm377 = vcmask 1043456
      %v379 = vsel %vm377, %v311, 0
      %381 = vmatprep.subr.bf16.mxu0 0
      %382 = vmatpush1.bf16.msra.mxu0 %v379
      %383 = vmatprep.subr.bf16.mxu0 0
      %384 = vmatpush1.bf16.msra.mxu0 0
      %385 = vmatprep.subr.bf16.mxu0 0
      %386 = vmatpush1.bf16.msra.mxu0 0
      %387 = vmatprep.subr.bf16.mxu0 0
      %388 = vmatpush1.bf16.msra.mxu0 0
      %389 = vmatprep.subr.bf16.mxu0 0
      %390 = vmatpush1.bf16.msra.mxu0 0
      %391 = vmatprep.subr.bf16.mxu0 0
      %392 = vmatpush1.bf16.msra.mxu0 0
      %393 = vmatprep.subr.bf16.mxu0 0
      %394 = vmatpush1.bf16.msra.mxu0 0
      %395 = vmatprep.subr.bf16.mxu0 0
      %396 = vmatpush1.bf16.msra.mxu0 0
      %397 = vmatprep.subr.bf16.mxu0 0
      %398 = vmatpush1.bf16.msra.mxu0 0
      %399 = vmatprep.subr.bf16.mxu0 0
      %400 = vmatpush1.bf16.msra.mxu0 0
      %401 = vmatprep.subr.bf16.mxu0 0
      %402 = vmatpush1.bf16.msra.mxu0 0
      %403 = vmatprep.subr.bf16.mxu0 0
      %404 = vmatpush1.bf16.msra.mxu0 0
      %405 = vmatprep.subr.bf16.mxu0 0
      %406 = vmatpush1.bf16.msra.mxu0 0
      %407 = vmatprep.subr.bf16.mxu0 0
      %408 = vmatpush1.bf16.msra.mxu0 0
      %409 = vmatprep.subr.bf16.mxu0 0
      %410 = vmatpush1.bf16.msra.mxu0 0
      %411 = vmatprep.subr.bf16.mxu0 0
      %412 = vmatpush1.bf16.msra.mxu0 0
      %413 = vmatprep.mubr.bf16.mxu0 0
      %414 = vmatmul.mubr.bf16.gmra.mrb[0].mxu0 %v375
      %v415 = vpop.f32.mrb[0].mxu0
      %v416 = vadd.f32 0.0, %v415
      %v417 = vpop.f32.mrb[0].mxu0
      %v418 = vpop.f32.mrb[0].mxu0
      %v419 = vpop.f32.mrb[0].mxu0
      %420 = vdwg.mxu0
      %v421 = vpack.c.bf16 %v416, %v416
      %vm422 = vcmask 60416
      %423 = vst.msk [vmem:[%s307] sm:$0xf] %vm422, %v421
      %p424 = scmp.lt.s32.totalorder %s19, 1
      %s425 = scalar_select %p424, %s19, 1
      %p426 = scmp.lt.s32.totalorder %s20, 3
      %s427 = scalar_select %p426, %s20, 3
      %s428 = smul.addr %s425, 4
      %s429 = sadd.s32 %s427, %s428
      %s430 = smul.addr %s429, 4
      %s431 = scalar_lea.vmem %s4, %s430
      // Predicated region
      $region37: #{transformer_forward.9} parent=35 // pred_check
        %p432 = pneg %p157
      $region38: #{transformer_forward.9} parent=35 // pred_check_branch
        %434 = sbr.rel (%p432) target = $region40
      $region39: #{transformer_forward.9} parent=35 // pred_region
        _
      $region40: #{transformer_forward.9} parent=35 // pred_fallthru
        _
    $region36: #{transformer_forward.9} parent=5 // pred_fallthru
      _
    %p435 = scmp.le.s32.totalorder 2, %s10
    // Predicated region
    $region41: #{transformer_forward.9} parent=5 // pred_check
      %p436 = pneg %p435
    $region42: #{transformer_forward.9} parent=5 // pred_check_branch
      %438 = sbr.rel (%p436) target = $region44
    $region43: #{transformer_forward.9} parent=5 // pred_region
      %s439 = ssub.s32 %s10, 2
      // Predicated region
      $region45: #{transformer_forward.9} parent=43 // pred_check
        %p440 = pneg %p163
      $region46: #{transformer_forward.9} parent=43 // pred_check_branch
        %442 = sbr.rel (%p440) target = $region48
      $region47: #{transformer_forward.9} parent=43 // pred_region
        %p443 = scmp.lt.s32.totalorder %s21, 1
        %s444 = scalar_select %p443, %s21, 1
        %p445 = scmp.lt.s32.totalorder %s22, 3
        %s446 = scalar_select %p445, %s22, 3
        %s447 = smul.addr %s444, 4
        %s448 = sadd.s32 %s446, %s447
        %s449 = smul.addr %s448, 4
        %s450 = scalar_lea.vmem %s4, %s449
      $region48: #{transformer_forward.9} parent=43 // pred_fallthru
        _
    $region44: #{transformer_forward.9} parent=5 // pred_fallthru
      _
  $region6: #{transformer_forward.9} parent=0 // loop_footer
    %s14 = sadd.s32 1, %s10
  $region7: #{transformer_forward.9} parent=0 // loop_footer_branch
    %9 = sbr.rel target = $region3
  $region8: #{transformer_forward.9} parent=0 // loop_exit
    _

// kernel: transformer_forward.10
$region0: #{transformer_forward.10}
  #allocation0 [shape = 'u32[]', space=smem, size = 0x4, offset = 0x4, fixed_abs, tag = 'smem constant byte address 0x4 - core index']
  #allocation1 [shape = 'u32[144,128]{1,0:T(1,128)}', space=vmem, size = 0x12000, scoped, tag = 'internal scratch']
  %s0 = inlined_call_operand.vmem [shape: bf16[2,8,32], index: 0, kind: input, shape index: {}]
  %s1 = inlined_call_operand.vmem [shape: f32[2,8,32], index: 1, kind: input, shape index: {}]
  %s2 = inlined_call_operand.vmem [shape: bf16[32,32], index: 2, kind: input, shape index: {}]
  %s3 = inlined_call_operand.vmem [shape: f32[1,32], index: 3, kind: input, shape index: {}]
  %s4 = inlined_call_operand.vmem [shape: f32[2,8,32], index: 4, kind: output, shape index: {}]
  %s5 = sld [smem:[#allocation0]]
  $region49: #{transformer_forward.10} parent=0
    _
  %s7 = ssub.s32 1, %s5
  %s8 = scalar_select 0, %s7, %s5
  loop: start=0, step=1, limit=4
  $region2: #{transformer_forward.10} parent=0 // loop_pre_header
    _
  $region3: #{transformer_forward.10} parent=0 // loop_header
    %s10 = sphi 0, %s14
    %p11 = scmp.ge.s32.totalorder %s10, 4
    %s17 = sphi 0, %s36
    %s18 = sphi 0, %s32
    %s19 = sphi 0, %s28
    %s20 = sphi 0, %s17
    %s21 = sphi 0, %s18
    %s22 = sphi 0, %s19
    %s23 = sphi 0, %s20
    %s24 = sphi 0, %s21
    %s25 = sphi 0, %s22
    %s41 = sphi 0, %s43
    %s44 = sphi 0, %s41
    %s45 = sphi 0, %s44
    %s61 = sphi 0, %s45
    %s71 = sphi 0, %s73
    %s74 = sphi 0, %s71
    %s75 = sphi 0, %s74
    %s91 = sphi 0, %s75
    %s97 = sphi 0, %s99
    %s100 = sphi 0, %s97
    %s101 = sphi 0, %s100
    %s117 = sphi 0, %s101
    %s123 = sphi 0, %s125
    %s126 = sphi 0, %s123
    %s127 = sphi 0, %s126
    %s143 = sphi 0, %s127
    %s153 = sphi 0, %s155
    %s156 = sphi 0, %s153
    %s157 = sphi 0, %s156
    %s173 = sphi 0, %s157
  $region4: #{transformer_forward.10} parent=0 // loop_header_branch
    %13 = sbr.rel (%p11) target = $region8
  $region5: #{transformer_forward.10} parent=0 // loop_body
    %s15 = ssub.s32 %s10, 1
    %s16 = ssub.s32 %s10, 2
    %s26 = sadd.s32 1, %s19
    %p27 = scmp.ge.s32.totalorder %s26, 1
    %s28 = scalar_select %p27, 0, %s26
    %s29 = sadd.s32 1, %s18
    %s30 = scalar_select %p27, %s29, %s18
    %p31 = scmp.ge.s32.totalorder %s30, 1
    %s32 = scalar_select %p31, 0, %s30
    %s33 = sadd.s32 1, %s17
    %s34 = scalar_select %p31, %s33, %s17
    %p35 = scmp.ge.s32.totalorder %s34, 2
    %s36 = scalar_select %p35, 0, %s34
    %s37 = ssub.s32 %s17, %s36
    %s38 = ssub.s32 %s18, %s32
    %s39 = sor.u32 %s37, %s38
    %p40 = scmp.eq.s32.totalorder %s39, 0
    %s42 = sadd.s32 %s41, 1
    %s43 = scalar_select %p40, %s41, %s42
    %p46 = pneg %p40
    %p47 = scmp.eq.s32.totalorder %s10, 1
    %p48 = por %p46, %p47
    %p49 = scmp.ne.s32.totalorder %s41, %s44
    %p50 = scmp.eq.s32.totalorder %s10, 0
    %p51 = por %p49, %p50
    %p52 = scmp.ne.s32.totalorder %s41, %s44
    %p53 = scmp.eq.s32.totalorder %s15, 1
    %p54 = por %p52, %p53
    %p55 = scmp.ne.s32.totalorder %s44, %s45
    %p56 = scmp.eq.s32.totalorder %s15, 0
    %p57 = por %p55, %p56
    %p58 = scmp.ne.s32.totalorder %s44, %s45
    %p59 = scmp.eq.s32.totalorder %s16, 1
    %p60 = por %p58, %p59
    %p62 = scmp.ne.s32.totalorder %s45, %s61
    %p63 = scmp.eq.s32.totalorder %s16, 0
    %p64 = por %p62, %p63
    %s65 = ssub.s32 %s17, %s36
    %s66 = ssub.s32 %s18, %s32
    %s67 = sor.u32 %s65, %s66
    %s68 = ssub.s32 %s19, %s28
    %s69 = sor.u32 %s67, %s68
    %p70 = scmp.eq.s32.totalorder %s69, 0
    %s72 = sadd.s32 %s71, 1
    %s73 = scalar_select %p70, %s71, %s72
    %p76 = pneg %p70
    %p77 = scmp.eq.s32.totalorder %s10, 1
    %p78 = por %p76, %p77
    %p79 = scmp.ne.s32.totalorder %s71, %s74
    %p80 = scmp.eq.s32.totalorder %s10, 0
    %p81 = por %p79, %p80
    %p82 = scmp.ne.s32.totalorder %s71, %s74
    %p83 = scmp.eq.s32.totalorder %s15, 1
    %p84 = por %p82, %p83
    %p85 = scmp.ne.s32.totalorder %s74, %s75
    %p86 = scmp.eq.s32.totalorder %s15, 0
    %p87 = por %p85, %p86
    %p88 = scmp.ne.s32.totalorder %s74, %s75
    %p89 = scmp.eq.s32.totalorder %s16, 1
    %p90 = por %p88, %p89
    %p92 = scmp.ne.s32.totalorder %s75, %s91
    %p93 = scmp.eq.s32.totalorder %s16, 0
    %p94 = por %p92, %p93
    %s95 = ssub.s32 %s19, %s28
    %p96 = scmp.eq.s32.totalorder %s95, 0
    %s98 = sadd.s32 %s97, 1
    %s99 = scalar_select %p96, %s97, %s98
    %p102 = pneg %p96
    %p103 = scmp.eq.s32.totalorder %s10, 1
    %p104 = por %p102, %p103
    %p105 = scmp.ne.s32.totalorder %s97, %s100
    %p106 = scmp.eq.s32.totalorder %s10, 0
    %p107 = por %p105, %p106
    %p108 = scmp.ne.s32.totalorder %s97, %s100
    %p109 = scmp.eq.s32.totalorder %s15, 1
    %p110 = por %p108, %p109
    %p111 = scmp.ne.s32.totalorder %s100, %s101
    %p112 = scmp.eq.s32.totalorder %s15, 0
    %p113 = por %p111, %p112
    %p114 = scmp.ne.s32.totalorder %s100, %s101
    %p115 = scmp.eq.s32.totalorder %s16, 1
    %p116 = por %p114, %p115
    %p118 = scmp.ne.s32.totalorder %s101, %s117
    %p119 = scmp.eq.s32.totalorder %s16, 0
    %p120 = por %p118, %p119
    %s121 = ssub.s32 %s19, %s28
    %p122 = scmp.eq.s32.totalorder %s121, 0
    %s124 = sadd.s32 %s123, 1
    %s125 = scalar_select %p122, %s123, %s124
    %p128 = pneg %p122
    %p129 = scmp.eq.s32.totalorder %s10, 1
    %p130 = por %p128, %p129
    %p131 = scmp.ne.s32.totalorder %s123, %s126
    %p132 = scmp.eq.s32.totalorder %s10, 0
    %p133 = por %p131, %p132
    %p134 = scmp.ne.s32.totalorder %s123, %s126
    %p135 = scmp.eq.s32.totalorder %s15, 1
    %p136 = por %p134, %p135
    %p137 = scmp.ne.s32.totalorder %s126, %s127
    %p138 = scmp.eq.s32.totalorder %s15, 0
    %p139 = por %p137, %p138
    %p140 = scmp.ne.s32.totalorder %s126, %s127
    %p141 = scmp.eq.s32.totalorder %s16, 1
    %p142 = por %p140, %p141
    %p144 = scmp.ne.s32.totalorder %s127, %s143
    %p145 = scmp.eq.s32.totalorder %s16, 0
    %p146 = por %p144, %p145
    %s147 = ssub.s32 %s17, %s36
    %s148 = ssub.s32 %s18, %s32
    %s149 = sor.u32 %s147, %s148
    %s150 = ssub.s32 %s19, %s28
    %s151 = sor.u32 %s149, %s150
    %p152 = scmp.eq.s32.totalorder %s151, 0
    %s154 = sadd.s32 %s153, 1
    %s155 = scalar_select %p152, %s153, %s154
    %p158 = pneg %p152
    %p159 = scmp.eq.s32.totalorder %s10, 1
    %p160 = por %p158, %p159
    %p161 = scmp.ne.s32.totalorder %s153, %s156
    %p162 = scmp.eq.s32.totalorder %s10, 0
    %p163 = por %p161, %p162
    %p164 = scmp.ne.s32.totalorder %s153, %s156
    %p165 = scmp.eq.s32.totalorder %s15, 1
    %p166 = por %p164, %p165
    %p167 = scmp.ne.s32.totalorder %s156, %s157
    %p168 = scmp.eq.s32.totalorder %s15, 0
    %p169 = por %p167, %p168
    %p170 = scmp.ne.s32.totalorder %s156, %s157
    %p171 = scmp.eq.s32.totalorder %s16, 1
    %p172 = por %p170, %p171
    %p174 = scmp.ne.s32.totalorder %s157, %s173
    %p175 = scmp.eq.s32.totalorder %s16, 0
    %p176 = por %p174, %p175
    %p177 = scmp.le.s32.totalorder 1, %s10
    %p178 = scmp.lt.s32.totalorder %s10, 3
    %p179 = pnand %p177, %p178
    %p180 = pneg %p179
    // Predicated region
    $region9: #{transformer_forward.10} parent=5 // pred_check
      _
    $region10: #{transformer_forward.10} parent=5 // pred_check_branch
      %182 = sbr.rel (%p179) target = $region12
    $region11: #{transformer_forward.10} parent=5 // pred_region
      %s183 = ssub.s32 %s10, 1
      // Predicated region
      $region13: #{transformer_forward.10} parent=11 // pred_check
        %p184 = pneg %p113
      $region14: #{transformer_forward.10} parent=11 // pred_check_branch
        %186 = sbr.rel (%p184) target = $region16
      $region15: #{transformer_forward.10} parent=11 // pred_region
        %p187 = scmp.lt.s32.totalorder %s22, 0
        %s188 = scalar_select %p187, %s22, 0
        %s189 = smul.addr %s188, 4
        %s190 = scalar_lea.vmem %s2, %s189
      $region16: #{transformer_forward.10} parent=11 // pred_fallthru
        _
      // Predicated region
      $region17: #{transformer_forward.10} parent=11 // pred_check
        %p191 = pneg %p139
      $region18: #{transformer_forward.10} parent=11 // pred_check_branch
        %193 = sbr.rel (%p191) target = $region20
      $region19: #{transformer_forward.10} parent=11 // pred_region
        %p194 = scmp.lt.s32.totalorder %s22, 0
        %s195 = scalar_select %p194, %s22, 0
        %s196 = scalar_lea.vmem %s3, %s195
      $region20: #{transformer_forward.10} parent=11 // pred_fallthru
        _
    $region12: #{transformer_forward.10} parent=5 // pred_fallthru
      _
    %p197 = scmp.lt.s32.totalorder %s10, 2
    // Predicated region
    $region21: #{transformer_forward.10} parent=5 // pred_check
      %p198 = pneg %p197
    $region22: #{transformer_forward.10} parent=5 // pred_check_branch
      %200 = sbr.rel (%p198) target = $region24
    $region23: #{transformer_forward.10} parent=5 // pred_region
      // Predicated region
      $region25: #{transformer_forward.10} parent=23 // pred_check
        %p201 = pneg %p51
      $region26: #{transformer_forward.10} parent=23 // pred_check_branch
        %203 = sbr.rel (%p201) target = $region28
      $region27: #{transformer_forward.10} parent=23 // pred_region
        %p204 = scmp.lt.s32.totalorder %s17, 1
        %s205 = scalar_select %p204, %s17, 1
        %p206 = scmp.lt.s32.totalorder %s18, 0
        %s207 = scalar_select %p206, %s18, 0
        %s208 = sadd.s32 %s207, %s205
        %s209 = smul.addr %s208, 4
        %s210 = scalar_lea.vmem %s0, %s209
      $region28: #{transformer_forward.10} parent=23 // pred_fallthru
        _
      // Predicated region
      $region29: #{transformer_forward.10} parent=23 // pred_check
        %p211 = pneg %p81
      $region30: #{transformer_forward.10} parent=23 // pred_check_branch
        %213 = sbr.rel (%p211) target = $region32
      $region31: #{transformer_forward.10} parent=23 // pred_region
        %p214 = scmp.lt.s32.totalorder %s17, 1
        %s215 = scalar_select %p214, %s17, 1
        %p216 = scmp.lt.s32.totalorder %s18, 0
        %s217 = scalar_select %p216, %s18, 0
        %p218 = scmp.lt.s32.totalorder %s19, 0
        %s219 = scalar_select %p218, %s19, 0
        %s220 = sadd.s32 %s219, %s217
        %s221 = sadd.s32 %s220, %s215
        %s222 = smul.addr %s221, 8
        %s223 = scalar_lea.vmem %s1, %s222
      $region32: #{transformer_forward.10} parent=23 // pred_fallthru
        _
    $region24: #{transformer_forward.10} parent=5 // pred_fallthru
      _
    %p224 = scmp.le.s32.totalorder 1, %s10
    %p225 = scmp.lt.s32.totalorder %s10, 3
    %p226 = pnand %p224, %p225
    %p227 = pneg %p226
    // Predicated region
    $region33: #{transformer_forward.10} parent=5 // pred_check
      _
    $region34: #{transformer_forward.10} parent=5 // pred_check_branch
      %229 = sbr.rel (%p226) target = $region36
    $region35: #{transformer_forward.10} parent=5 // pred_region
      %s230 = ssub.s32 %s10, 1
      %p231 = scmp.lt.s32.totalorder %s20, 1
      %s232 = scalar_select %p231, %s20, 1
      %p233 = scmp.lt.s32.totalorder %s21, 0
      %s234 = scalar_select %p233, %s21, 0
      %s235 = sadd.s32 %s234, %s232
      %s236 = smul.addr %s235, 4
      %s237 = scalar_lea.vmem %s0, %s236
      %p238 = pneg %p57
      %p239 = pneg %p54
      %p240 = scmp.lt.s32.totalorder %s20, 1
      %s241 = scalar_select %p240, %s20, 1
      %p242 = scmp.lt.s32.totalorder %s21, 0
      %s243 = scalar_select %p242, %s21, 0
      %p244 = scmp.lt.s32.totalorder %s22, 0
      %s245 = scalar_select %p244, %s22, 0
      %s246 = sadd.s32 %s245, %s243
      %s247 = sadd.s32 %s246, %s241
      %s248 = smul.addr %s247, 8
      %s249 = scalar_lea.vmem %s1, %s248
      %p250 = pneg %p87
      %p251 = pneg %p84
      %p252 = scmp.lt.s32.totalorder %s22, 0
      %s253 = scalar_select %p252, %s22, 0
      %s254 = smul.addr %s253, 4
      %s255 = scalar_lea.vmem %s2, %s254
      %p256 = pneg %p113
      %p257 = pneg %p110
      %p258 = scmp.lt.s32.totalorder %s22, 0
      %s259 = scalar_select %p258, %s22, 0
      %s260 = scalar_lea.vmem %s3, %s259
      %p261 = pneg %p139
      %p262 = pneg %p136
      %p263 = pneg %p169
      %p264 = pneg %p166
      %p265 = scmp.lt.s32.totalorder %s20, 1
      %s266 = scalar_select %p265, %s20, 1
      %p267 = scmp.lt.s32.totalorder %s21, 0
      %s268 = scalar_select %p267, %s21, 0
      %p269 = scmp.lt.s32.totalorder %s22, 0
      %s270 = scalar_select %p269, %s22, 0
      %s271 = sadd.s32 %s270, %s268
      %s272 = sadd.s32 %s271, %s266
      %s273 = smul.addr %s272, 8
      %s274 = scalar_lea.vmem %s4, %s273
      %p275 = scmp.lt.s32.totalorder %s20, 1
      %s276 = scalar_select %p275, %s20, 1
      %p277 = scmp.lt.s32.totalorder %s21, 0
      %s278 = scalar_select %p277, %s21, 0
      %s279 = sadd.s32 %s278, %s276
      %s280 = smul.addr %s279, 4
      %s281 = scalar_lea.vmem %s0, %s280
      %p282 = scmp.lt.s32.totalorder %s20, 1
      %s283 = scalar_select %p282, %s20, 1
      %p284 = scmp.lt.s32.totalorder %s21, 0
      %s285 = scalar_select %p284, %s21, 0
      %p286 = scmp.lt.s32.totalorder %s22, 0
      %s287 = scalar_select %p286, %s22, 0
      %s288 = sadd.s32 %s287, %s285
      %s289 = sadd.s32 %s288, %s283
      %s290 = smul.addr %s289, 8
      %s291 = scalar_lea.vmem %s1, %s290
      %p292 = scmp.lt.s32.totalorder %s22, 0
      %s293 = scalar_select %p292, %s22, 0
      %s294 = smul.addr %s293, 4
      %s295 = scalar_lea.vmem %s2, %s294
      %p296 = scmp.lt.s32.totalorder %s22, 0
      %s297 = scalar_select %p296, %s22, 0
      %s298 = scalar_lea.vmem %s3, %s297
      %p299 = scmp.lt.s32.totalorder %s20, 1
      %s300 = scalar_select %p299, %s20, 1
      %p301 = scmp.lt.s32.totalorder %s21, 0
      %s302 = scalar_select %p301, %s21, 0
      %p303 = scmp.lt.s32.totalorder %s22, 0
      %s304 = scalar_select %p303, %s22, 0
      %s305 = sadd.s32 %s304, %s302
      %s306 = sadd.s32 %s305, %s300
      %s307 = smul.addr %s306, 8
      %s308 = scalar_lea.vmem %s4, %s307
      %v310 = vld [vmem:[%s281] sm:$0xf]
      %v311 = vld [vmem:[%s295] sm:$0xf]
      %v312 = vld [vmem:[%s295 + $0x4] sm:$0xf]
      %v313 = vld [vmem:[%s295 + $0x8] sm:$0xf]
      %v314 = vld [vmem:[%s295 + $0xc] sm:$0xf]
      %v315 = vld [vmem:[%s298] sm:$0x1]
      %v317 = vlaneseq
      %v318 = vshrl.u32 %v317, 7
      %v319 = vsub.s32 0, %v318
      %v320 = vrot.slane %v315, %v319
      %v326 = vunpack.c.l.b16 %v311
      %v327 = vunpack.c.l.b16 %v312
      %v328 = vunpack.c.l.b16 %v313
      %v329 = vunpack.c.l.b16 %v314
      %v330 = vpack.c.b16 %v327, %v326
      %v331 = vpack.c.b16 %v329, %v328
      %vm334 = vcmask 261120
      %v336 = vsel %vm334, %v310, 0
      %338 = vmatprep.subr.bf16.mxu0 0
      %339 = vmatpush1.bf16.msra.mxu0 %v330
      %340 = vmatprep.subr.bf16.mxu0 0
      %341 = vmatpush1.bf16.msra.mxu0 %v331
      %342 = vmatprep.subr.bf16.mxu0 0
      %343 = vmatpush1.bf16.msra.mxu0 0
      %344 = vmatprep.subr.bf16.mxu0 0
      %345 = vmatpush1.bf16.msra.mxu0 0
      %346 = vmatprep.subr.bf16.mxu0 0
      %347 = vmatpush1.bf16.msra.mxu0 0
      %348 = vmatprep.subr.bf16.mxu0 0
      %349 = vmatpush1.bf16.msra.mxu0 0
      %350 = vmatprep.subr.bf16.mxu0 0
      %351 = vmatpush1.bf16.msra.mxu0 0
      %352 = vmatprep.subr.bf16.mxu0 0
      %353 = vmatpush1.bf16.msra.mxu0 0
      %354 = vmatprep.subr.bf16.mxu0 0
      %355 = vmatpush1.bf16.msra.mxu0 0
      %356 = vmatprep.subr.bf16.mxu0 0
      %357 = vmatpush1.bf16.msra.mxu0 0
      %358 = vmatprep.subr.bf16.mxu0 0
      %359 = vmatpush1.bf16.msra.mxu0 0
      %360 = vmatprep.subr.bf16.mxu0 0
      %361 = vmatpush1.bf16.msra.mxu0 0
      %362 = vmatprep.subr.bf16.mxu0 0
      %363 = vmatpush1.bf16.msra.mxu0 0
      %364 = vmatprep.subr.bf16.mxu0 0
      %365 = vmatpush1.bf16.msra.mxu0 0
      %366 = vmatprep.subr.bf16.mxu0 0
      %367 = vmatpush1.bf16.msra.mxu0 0
      %368 = vmatprep.subr.bf16.mxu0 0
      %369 = vmatpush1.bf16.msra.mxu0 0
      %370 = vmatprep.mubr.bf16.mxu0 0
      %371 = vmatmul.mubr.bf16.gmra.mrb[0].mxu0 %v336
      %v372 = vpop.f32.mrb[0].mxu0
      %v373 = vadd.f32 %v320, %v372
      %v374 = vpop.f32.mrb[0].mxu0
      %v375 = vpop.f32.mrb[0].mxu0
      %v376 = vpop.f32.mrb[0].mxu0
      %377 = vdwg.mxu0
      %v378 = vld [vmem:[%s291] sm:$0xff]
      %v379 = vadd.f32 %v373, %v378
      %380 = vst.msk [vmem:[%s308] sm:$0xff] %vm334, %v379
      %p381 = scmp.lt.s32.totalorder %s20, 1
      %s382 = scalar_select %p381, %s20, 1
      %p383 = scmp.lt.s32.totalorder %s21, 0
      %s384 = scalar_select %p383, %s21, 0
      %p385 = scmp.lt.s32.totalorder %s22, 0
      %s386 = scalar_select %p385, %s22, 0
      %s387 = sadd.s32 %s386, %s384
      %s388 = sadd.s32 %s387, %s382
      %s389 = smul.addr %s388, 8
      %s390 = scalar_lea.vmem %s4, %s389
      // Predicated region
      $region37: #{transformer_forward.10} parent=35 // pred_check
        %p391 = pneg %p166
      $region38: #{transformer_forward.10} parent=35 // pred_check_branch
        %393 = sbr.rel (%p391) target = $region40
      $region39: #{transformer_forward.10} parent=35 // pred_region
        _
      $region40: #{transformer_forward.10} parent=35 // pred_fallthru
        _
    $region36: #{transformer_forward.10} parent=5 // pred_fallthru
      _
    %p394 = scmp.le.s32.totalorder 2, %s10
    // Predicated region
    $region41: #{transformer_forward.10} parent=5 // pred_check
      %p395 = pneg %p394
    $region42: #{transformer_forward.10} parent=5 // pred_check_branch
      %397 = sbr.rel (%p395) target = $region44
    $region43: #{transformer_forward.10} parent=5 // pred_region
      %s398 = ssub.s32 %s10, 2
      // Predicated region
      $region45: #{transformer_forward.10} parent=43 // pred_check
        %p399 = pneg %p172
      $region46: #{transformer_forward.10} parent=43 // pred_check_branch
        %401 = sbr.rel (%p399) target = $region48
      $region47: #{transformer_forward.10} parent=43 // pred_region
        %p402 = scmp.lt.s32.totalorder %s23, 1
        %s403 = scalar_select %p402, %s23, 1
        %p404 = scmp.lt.s32.totalorder %s24, 0
        %s405 = scalar_select %p404, %s24, 0
        %p406 = scmp.lt.s32.totalorder %s25, 0
        %s407 = scalar_select %p406, %s25, 0
        %s408 = sadd.s32 %s407, %s405
        %s409 = sadd.s32 %s408, %s403
        %s410 = smul.addr %s409, 8
        %s411 = scalar_lea.vmem %s4, %s410
      $region48: #{transformer_forward.10} parent=43 // pred_fallthru
        _
    $region44: #{transformer_forward.10} parent=5 // pred_fallthru
      _
  $region6: #{transformer_forward.10} parent=0 // loop_footer
    %s14 = sadd.s32 1, %s10
  $region7: #{transformer_forward.10} parent=0 // loop_footer_branch
    %9 = sbr.rel target = $region3
  $region8: #{transformer_forward.10} parent=0 // loop_exit
    _

// kernel: transformer_forward.11
$region0: #{transformer_forward.11}
  #allocation0 [shape = 'u32[]', space=smem, size = 0x4, offset = 0x4, fixed_abs, tag = 'smem constant byte address 0x4 - core index']
  #allocation1 [shape = 'u32[144,128]{1,0:T(1,128)}', space=vmem, size = 0x12000, scoped, tag = 'internal scratch']
  #allocation2 [shape = 'bf16[8,32]{1,0:T(8,128)(2,1)}', space=vmem, size = 0x800, scoped, tag = 'scratch operand']
  #allocation3 [shape = 'f32[8,32]{1,0:T(8,128)}', space=vmem, size = 0x1000, scoped, tag = 'scratch operand']
  %s0 = inlined_call_operand.vmem [shape: f32[2,8,32], index: 0, kind: input, shape index: {}]
  %s1 = inlined_call_operand.vmem [shape: f32[1,32], index: 1, kind: input, shape index: {}]
  %s2 = inlined_call_operand.vmem [shape: f32[1,32], index: 2, kind: input, shape index: {}]
  %s3 = inlined_call_operand.vmem [shape: bf16[32,128], index: 3, kind: input, shape index: {}]
  %s4 = inlined_call_operand.vmem [shape: f32[1,128], index: 4, kind: input, shape index: {}]
  %s5 = inlined_call_operand.vmem [shape: bf16[128,32], index: 5, kind: input, shape index: {}]
  %s6 = inlined_call_operand.vmem [shape: f32[1,32], index: 6, kind: input, shape index: {}]
  %s7 = inlined_call_operand.vmem [shape: f32[2,8,32], index: 7, kind: output, shape index: {}]
  %s8 = sld [smem:[#allocation0]]
  $region69: #{transformer_forward.11} parent=0
    _
  %s10 = ssub.s32 1, %s8
  %s11 = scalar_select 0, %s10, %s8
  loop: start=0, step=1, limit=4
  $region2: #{transformer_forward.11} parent=0 // loop_pre_header
    _
  $region3: #{transformer_forward.11} parent=0 // loop_header
    %s13 = sphi 0, %s17
    %p14 = scmp.ge.s32.totalorder %s13, 4
    %s20 = sphi 0, %s39
    %s21 = sphi 0, %s35
    %s22 = sphi 0, %s31
    %s23 = sphi 0, %s20
    %s24 = sphi 0, %s21
    %s25 = sphi 0, %s22
    %s26 = sphi 0, %s23
    %s27 = sphi 0, %s24
    %s28 = sphi 0, %s25
    %s44 = sphi 0, %s46
    %s47 = sphi 0, %s44
    %s48 = sphi 0, %s47
    %s64 = sphi 0, %s48
    %s68 = sphi 0, %s68
    %s70 = sphi 0, %s68
    %s71 = sphi 0, %s70
    %s85 = sphi 0, %s71
    %s89 = sphi 0, %s89
    %s91 = sphi 0, %s89
    %s92 = sphi 0, %s91
    %s106 = sphi 0, %s92
    %s112 = sphi 0, %s114
    %s115 = sphi 0, %s112
    %s116 = sphi 0, %s115
    %s132 = sphi 0, %s116
    %s138 = sphi 0, %s140
    %s141 = sphi 0, %s138
    %s142 = sphi 0, %s141
    %s158 = sphi 0, %s142
    %s164 = sphi 0, %s166
    %s167 = sphi 0, %s164
    %s168 = sphi 0, %s167
    %s184 = sphi 0, %s168
    %s188 = sphi 0, %s188
    %s190 = sphi 0, %s188
    %s191 = sphi 0, %s190
    %s205 = sphi 0, %s191
    %s213 = sphi 0, %s215
    %s216 = sphi 0, %s213
    %s217 = sphi 0, %s216
    %s233 = sphi 0, %s217
  $region4: #{transformer_forward.11} parent=0 // loop_header_branch
    %16 = sbr.rel (%p14) target = $region8
  $region5: #{transformer_forward.11} parent=0 // loop_body
    %s18 = ssub.s32 %s13, 1
    %s19 = ssub.s32 %s13, 2
    %s29 = sadd.s32 1, %s22
    %p30 = scmp.ge.s32.totalorder %s29, 1
    %s31 = scalar_select %p30, 0, %s29
    %s32 = sadd.s32 1, %s21
    %s33 = scalar_select %p30, %s32, %s21
    %p34 = scmp.ge.s32.totalorder %s33, 1
    %s35 = scalar_select %p34, 0, %s33
    %s36 = sadd.s32 1, %s20
    %s37 = scalar_select %p34, %s36, %s20
    %p38 = scmp.ge.s32.totalorder %s37, 2
    %s39 = scalar_select %p38, 0, %s37
    %s40 = ssub.s32 %s20, %s39
    %s41 = ssub.s32 %s21, %s35
    %s42 = sor.u32 %s40, %s41
    %p43 = scmp.eq.s32.totalorder %s42, 0
    %s45 = sadd.s32 %s44, 1
    %s46 = scalar_select %p43, %s44, %s45
    %p49 = pneg %p43
    %p50 = scmp.eq.s32.totalorder %s13, 1
    %p51 = por %p49, %p50
    %p52 = scmp.ne.s32.totalorder %s44, %s47
    %p53 = scmp.eq.s32.totalorder %s13, 0
    %p54 = por %p52, %p53
    %p55 = scmp.ne.s32.totalorder %s44, %s47
    %p56 = scmp.eq.s32.totalorder %s18, 1
    %p57 = por %p55, %p56
    %p58 = scmp.ne.s32.totalorder %s47, %s48
    %p59 = scmp.eq.s32.totalorder %s18, 0
    %p60 = por %p58, %p59
    %p61 = scmp.ne.s32.totalorder %s47, %s48
    %p62 = scmp.eq.s32.totalorder %s19, 1
    %p63 = por %p61, %p62
    %p65 = scmp.ne.s32.totalorder %s48, %s64
    %p66 = scmp.eq.s32.totalorder %s19, 0
    %p67 = por %p65, %p66
    %s69 = sadd.s32 %s68, 1
    %p72 = scmp.eq.s32.totalorder %s13, 1
    %p73 = scmp.ne.s32.totalorder %s68, %s70
    %p74 = scmp.eq.s32.totalorder %s13, 0
    %p75 = por %p73, %p74
    %p76 = scmp.ne.s32.totalorder %s68, %s70
    %p77 = scmp.eq.s32.totalorder %s18, 1
    %p78 = por %p76, %p77
    %p79 = scmp.ne.s32.totalorder %s70, %s71
    %p80 = scmp.eq.s32.totalorder %s18, 0
    %p81 = por %p79, %p80
    %p82 = scmp.ne.s32.totalorder %s70, %s71
    %p83 = scmp.eq.s32.totalorder %s19, 1
    %p84 = por %p82, %p83
    %p86 = scmp.ne.s32.totalorder %s71, %s85
    %p87 = scmp.eq.s32.totalorder %s19, 0
    %p88 = por %p86, %p87
    %s90 = sadd.s32 %s89, 1
    %p93 = scmp.eq.s32.totalorder %s13, 1
    %p94 = scmp.ne.s32.totalorder %s89, %s91
    %p95 = scmp.eq.s32.totalorder %s13, 0
    %p96 = por %p94, %p95
    %p97 = scmp.ne.s32.totalorder %s89, %s91
    %p98 = scmp.eq.s32.totalorder %s18, 1
    %p99 = por %p97, %p98
    %p100 = scmp.ne.s32.totalorder %s91, %s92
    %p101 = scmp.eq.s32.totalorder %s18, 0
    %p102 = por %p100, %p101
    %p103 = scmp.ne.s32.totalorder %s91, %s92
    %p104 = scmp.eq.s32.totalorder %s19, 1
    %p105 = por %p103, %p104
    %p107 = scmp.ne.s32.totalorder %s92, %s106
    %p108 = scmp.eq.s32.totalorder %s19, 0
    %p109 = por %p107, %p108
    %s110 = ssub.s32 %s22, %s31
    %p111 = scmp.eq.s32.totalorder %s110, 0
    %s113 = sadd.s32 %s112, 1
    %s114 = scalar_select %p111, %s112, %s113
    %p117 = pneg %p111
    %p118 = scmp.eq.s32.totalorder %s13, 1
    %p119 = por %p117, %p118
    %p120 = scmp.ne.s32.totalorder %s112, %s115
    %p121 = scmp.eq.s32.totalorder %s13, 0
    %p122 = por %p120, %p121
    %p123 = scmp.ne.s32.totalorder %s112, %s115
    %p124 = scmp.eq.s32.totalorder %s18, 1
    %p125 = por %p123, %p124
    %p126 = scmp.ne.s32.totalorder %s115, %s116
    %p127 = scmp.eq.s32.totalorder %s18, 0
    %p128 = por %p126, %p127
    %p129 = scmp.ne.s32.totalorder %s115, %s116
    %p130 = scmp.eq.s32.totalorder %s19, 1
    %p131 = por %p129, %p130
    %p133 = scmp.ne.s32.totalorder %s116, %s132
    %p134 = scmp.eq.s32.totalorder %s19, 0
    %p135 = por %p133, %p134
    %s136 = ssub.s32 %s22, %s31
    %p137 = scmp.eq.s32.totalorder %s136, 0
    %s139 = sadd.s32 %s138, 1
    %s140 = scalar_select %p137, %s138, %s139
    %p143 = pneg %p137
    %p144 = scmp.eq.s32.totalorder %s13, 1
    %p145 = por %p143, %p144
    %p146 = scmp.ne.s32.totalorder %s138, %s141
    %p147 = scmp.eq.s32.totalorder %s13, 0
    %p148 = por %p146, %p147
    %p149 = scmp.ne.s32.totalorder %s138, %s141
    %p150 = scmp.eq.s32.totalorder %s18, 1
    %p151 = por %p149, %p150
    %p152 = scmp.ne.s32.totalorder %s141, %s142
    %p153 = scmp.eq.s32.totalorder %s18, 0
    %p154 = por %p152, %p153
    %p155 = scmp.ne.s32.totalorder %s141, %s142
    %p156 = scmp.eq.s32.totalorder %s19, 1
    %p157 = por %p155, %p156
    %p159 = scmp.ne.s32.totalorder %s142, %s158
    %p160 = scmp.eq.s32.totalorder %s19, 0
    %p161 = por %p159, %p160
    %s162 = ssub.s32 %s22, %s31
    %p163 = scmp.eq.s32.totalorder %s162, 0
    %s165 = sadd.s32 %s164, 1
    %s166 = scalar_select %p163, %s164, %s165
    %p169 = pneg %p163
    %p170 = scmp.eq.s32.totalorder %s13, 1
    %p171 = por %p169, %p170
    %p172 = scmp.ne.s32.totalorder %s164, %s167
    %p173 = scmp.eq.s32.totalorder %s13, 0
    %p174 = por %p172, %p173
    %p175 = scmp.ne.s32.totalorder %s164, %s167
    %p176 = scmp.eq.s32.totalorder %s18, 1
    %p177 = por %p175, %p176
    %p178 = scmp.ne.s32.totalorder %s167, %s168
    %p179 = scmp.eq.s32.totalorder %s18, 0
    %p180 = por %p178, %p179
    %p181 = scmp.ne.s32.totalorder %s167, %s168
    %p182 = scmp.eq.s32.totalorder %s19, 1
    %p183 = por %p181, %p182
    %p185 = scmp.ne.s32.totalorder %s168, %s184
    %p186 = scmp.eq.s32.totalorder %s19, 0
    %p187 = por %p185, %p186
    %s189 = sadd.s32 %s188, 1
    %p192 = scmp.eq.s32.totalorder %s13, 1
    %p193 = scmp.ne.s32.totalorder %s188, %s190
    %p194 = scmp.eq.s32.totalorder %s13, 0
    %p195 = por %p193, %p194
    %p196 = scmp.ne.s32.totalorder %s188, %s190
    %p197 = scmp.eq.s32.totalorder %s18, 1
    %p198 = por %p196, %p197
    %p199 = scmp.ne.s32.totalorder %s190, %s191
    %p200 = scmp.eq.s32.totalorder %s18, 0
    %p201 = por %p199, %p200
    %p202 = scmp.ne.s32.totalorder %s190, %s191
    %p203 = scmp.eq.s32.totalorder %s19, 1
    %p204 = por %p202, %p203
    %p206 = scmp.ne.s32.totalorder %s191, %s205
    %p207 = scmp.eq.s32.totalorder %s19, 0
    %p208 = por %p206, %p207
    %s209 = ssub.s32 %s20, %s39
    %s210 = ssub.s32 %s21, %s35
    %s211 = sor.u32 %s209, %s210
    %p212 = scmp.eq.s32.totalorder %s211, 0
    %s214 = sadd.s32 %s213, 1
    %s215 = scalar_select %p212, %s213, %s214
    %p218 = pneg %p212
    %p219 = scmp.eq.s32.totalorder %s13, 1
    %p220 = por %p218, %p219
    %p221 = scmp.ne.s32.totalorder %s213, %s216
    %p222 = scmp.eq.s32.totalorder %s13, 0
    %p223 = por %p221, %p222
    %p224 = scmp.ne.s32.totalorder %s213, %s216
    %p225 = scmp.eq.s32.totalorder %s18, 1
    %p226 = por %p224, %p225
    %p227 = scmp.ne.s32.totalorder %s216, %s217
    %p228 = scmp.eq.s32.totalorder %s18, 0
    %p229 = por %p227, %p228
    %p230 = scmp.ne.s32.totalorder %s216, %s217
    %p231 = scmp.eq.s32.totalorder %s19, 1
    %p232 = por %p230, %p231
    %p234 = scmp.ne.s32.totalorder %s217, %s233
    %p235 = scmp.eq.s32.totalorder %s19, 0
    %p236 = por %p234, %p235
    %p237 = scmp.le.s32.totalorder 1, %s13
    %p238 = scmp.lt.s32.totalorder %s13, 3
    %p239 = pnand %p237, %p238
    %p240 = pneg %p239
    // Predicated region
    $region9: #{transformer_forward.11} parent=5 // pred_check
      _
    $region10: #{transformer_forward.11} parent=5 // pred_check_branch
      %242 = sbr.rel (%p239) target = $region12
    $region11: #{transformer_forward.11} parent=5 // pred_region
      %s243 = ssub.s32 %s13, 1
      // Predicated region
      $region13: #{transformer_forward.11} parent=11 // pred_check
        %p244 = pneg %p81
      $region14: #{transformer_forward.11} parent=11 // pred_check_branch
        %246 = sbr.rel (%p244) target = $region16
      $region15: #{transformer_forward.11} parent=11 // pred_region
        _
      $region16: #{transformer_forward.11} parent=11 // pred_fallthru
        _
      // Predicated region
      $region17: #{transformer_forward.11} parent=11 // pred_check
        %p247 = pneg %p102
      $region18: #{transformer_forward.11} parent=11 // pred_check_branch
        %249 = sbr.rel (%p247) target = $region20
      $region19: #{transformer_forward.11} parent=11 // pred_region
        _
      $region20: #{transformer_forward.11} parent=11 // pred_fallthru
        _
      // Predicated region
      $region21: #{transformer_forward.11} parent=11 // pred_check
        %p250 = pneg %p128
      $region22: #{transformer_forward.11} parent=11 // pred_check_branch
        %252 = sbr.rel (%p250) target = $region24
      $region23: #{transformer_forward.11} parent=11 // pred_region
        %p253 = scmp.lt.s32.totalorder %s25, 0
        %s254 = scalar_select %p253, %s25, 0
        %s255 = smul.addr %s254, 4
        %s256 = scalar_lea.vmem %s3, %s255
      $region24: #{transformer_forward.11} parent=11 // pred_fallthru
        _
      // Predicated region
      $region25: #{transformer_forward.11} parent=11 // pred_check
        %p257 = pneg %p154
      $region26: #{transformer_forward.11} parent=11 // pred_check_branch
        %259 = sbr.rel (%p257) target = $region28
      $region27: #{transformer_forward.11} parent=11 // pred_region
        %p260 = scmp.lt.s32.totalorder %s25, 0
        %s261 = scalar_select %p260, %s25, 0
        %s262 = scalar_lea.vmem %s4, %s261
      $region28: #{transformer_forward.11} parent=11 // pred_fallthru
        _
      // Predicated region
      $region29: #{transformer_forward.11} parent=11 // pred_check
        %p263 = pneg %p180
      $region30: #{transformer_forward.11} parent=11 // pred_check_branch
        %265 = sbr.rel (%p263) target = $region32
      $region31: #{transformer_forward.11} parent=11 // pred_region
        %s266 = smul.u32 16, %s25
        %p267 = scmp.lt.s32.totalorder %s266, 15
        %s268 = scalar_select %p267, %s266, 15
        %s269 = smul.addr %s268, 4
        %s270 = scalar_lea.vmem %s5, %s269
        %s271 = smul.u32 16, %s25
      $region32: #{transformer_forward.11} parent=11 // pred_fallthru
        _
      // Predicated region
      $region33: #{transformer_forward.11} parent=11 // pred_check
        %p272 = pneg %p201
      $region34: #{transformer_forward.11} parent=11 // pred_check_branch
        %274 = sbr.rel (%p272) target = $region36
      $region35: #{transformer_forward.11} parent=11 // pred_region
        _
      $region36: #{transformer_forward.11} parent=11 // pred_fallthru
        _
    $region12: #{transformer_forward.11} parent=5 // pred_fallthru
      _
    %p275 = scmp.lt.s32.totalorder %s13, 2
    // Predicated region
    $region37: #{transformer_forward.11} parent=5 // pred_check
      %p276 = pneg %p275
    $region38: #{transformer_forward.11} parent=5 // pred_check_branch
      %278 = sbr.rel (%p276) target = $region40
    $region39: #{transformer_forward.11} parent=5 // pred_region
      // Predicated region
      $region41: #{transformer_forward.11} parent=39 // pred_check
        %p279 = pneg %p54
      $region42: #{transformer_forward.11} parent=39 // pred_check_branch
        %281 = sbr.rel (%p279) target = $region44
      $region43: #{transformer_forward.11} parent=39 // pred_region
        %p282 = scmp.lt.s32.totalorder %s20, 1
        %s283 = scalar_select %p282, %s20, 1
        %p284 = scmp.lt.s32.totalorder %s21, 0
        %s285 = scalar_select %p284, %s21, 0
        %s286 = sadd.s32 %s285, %s283
        %s287 = smul.addr %s286, 8
        %s288 = scalar_lea.vmem %s0, %s287
      $region44: #{transformer_forward.11} parent=39 // pred_fallthru
        _
    $region40: #{transformer_forward.11} parent=5 // pred_fallthru
      _
    %p289 = scmp.le.s32.totalorder 1, %s13
    %p290 = scmp.lt.s32.totalorder %s13, 3
    %p291 = pnand %p289, %p290
    %p292 = pneg %p291
    // Predicated region
    $region45: #{transformer_forward.11} parent=5 // pred_check
      _
    $region46: #{transformer_forward.11} parent=5 // pred_check_branch
      %294 = sbr.rel (%p291) target = $region48
    $region47: #{transformer_forward.11} parent=5 // pred_region
      %s295 = ssub.s32 %s13, 1
      %p296 = scmp.lt.s32.totalorder %s23, 1
      %s297 = scalar_select %p296, %s23, 1
      %p298 = scmp.lt.s32.totalorder %s24, 0
      %s299 = scalar_select %p298, %s24, 0
      %s300 = sadd.s32 %s299, %s297
      %s301 = smul.addr %s300, 8
      %s302 = scalar_lea.vmem %s0, %s301
      %p303 = pneg %p60
      %p304 = pneg %p57
      %p305 = pneg %p81
      %p306 = pneg %p78
      %p307 = pneg %p102
      %p308 = pneg %p99
      %p309 = scmp.lt.s32.totalorder %s25, 0
      %s310 = scalar_select %p309, %s25, 0
      %s311 = smul.addr %s310, 4
      %s312 = scalar_lea.vmem %s3, %s311
      %p313 = pneg %p128
      %p314 = pneg %p125
      %p315 = scmp.lt.s32.totalorder %s25, 0
      %s316 = scalar_select %p315, %s25, 0
      %s317 = scalar_lea.vmem %s4, %s316
      %p318 = pneg %p154
      %p319 = pneg %p151
      %s320 = smul.u32 16, %s25
      %p321 = scmp.lt.s32.totalorder %s320, 15
      %s322 = scalar_select %p321, %s320, 15
      %s323 = smul.addr %s322, 4
      %s324 = scalar_lea.vmem %s5, %s323
      %p325 = pneg %p180
      %p326 = pneg %p177
      %p327 = pneg %p201
      %p328 = pneg %p198
      %p329 = pneg %p229
      %p330 = pneg %p226
      %p331 = scmp.lt.s32.totalorder %s23, 1
      %s332 = scalar_select %p331, %s23, 1
      %p333 = scmp.lt.s32.totalorder %s24, 0
      %s334 = scalar_select %p333, %s24, 0
      %s335 = sadd.s32 %s334, %s332
      %s336 = smul.addr %s335, 8
      %s337 = scalar_lea.vmem %s7, %s336
      %p338 = scmp.lt.s32.totalorder %s23, 1
      %s339 = scalar_select %p338, %s23, 1
      %p340 = scmp.lt.s32.totalorder %s24, 0
      %s341 = scalar_select %p340, %s24, 0
      %s342 = sadd.s32 %s341, %s339
      %s343 = smul.addr %s342, 8
      %s344 = scalar_lea.vmem %s0, %s343
      %p345 = scmp.lt.s32.totalorder %s25, 0
      %s346 = scalar_select %p345, %s25, 0
      %s347 = smul.addr %s346, 4
      %s348 = scalar_lea.vmem %s3, %s347
      %p349 = scmp.lt.s32.totalorder %s25, 0
      %s350 = scalar_select %p349, %s25, 0
      %s351 = scalar_lea.vmem %s4, %s350
      %s352 = smul.u32 16, %s25
      %p353 = scmp.lt.s32.totalorder %s352, 15
      %s354 = scalar_select %p353, %s352, 15
      %s355 = smul.addr %s354, 4
      %s356 = scalar_lea.vmem %s5, %s355
      %s357 = smul.u32 16, %s25
      %p358 = scmp.lt.s32.totalorder %s23, 1
      %s359 = scalar_select %p358, %s23, 1
      %p360 = scmp.lt.s32.totalorder %s24, 0
      %s361 = scalar_select %p360, %s24, 0
      %s362 = sadd.s32 %s361, %s359
      %s363 = smul.addr %s362, 8
      %s364 = scalar_lea.vmem %s7, %s363
      %p366 = scmp.eq.s32.totalorder %s25, 0
      // Predicated region
      $region49: #{transformer_forward.11} parent=47 // pred_check
        %p367 = pneg %p366
      $region50: #{transformer_forward.11} parent=47 // pred_check_branch
        %369 = sbr.rel (%p367) target = $region52
      $region51: #{transformer_forward.11} parent=47 // pred_region
        %v370 = vld [vmem:[%s344] sm:$0xff]
        %vm371 = vcmask 261120
        %v372 = vsel %vm371, %v370, 0.0
        %373 = vadd.xlane.f32.xlu0 %v372
        %v374 = vpop.xlane.xlu0 %373
        %v375 = vrcp.pop 32.0
        %v376 = vmul.f32 %v374, %v375
        %v377 = vsub.f32 %v370, %v376
        %v378 = vmul.f32 %v377, %v377
        %v379 = vsel %vm371, %v378, 0.0
        %380 = vadd.xlane.f32.xlu0 %v379
        %v381 = vpop.xlane.xlu0 %380
        %v382 = vmul.f32 %v381, %v375
        %v383 = vadd.f32 %v382, 1e-05
        %v384 = vrsqrt.pop %v383
        %v385 = vmul.f32 %v377, %v384
        %v386 = vld [vmem:[%s1] sm:$0x1]
        %v388 = vlaneseq
        %v389 = vshrl.u32 %v388, 7
        %v390 = vsub.s32 0, %v389
        %v391 = vrot.slane %v386, %v390
        %v393 = vmul.f32 %v385, %v391
        %v394 = vld [vmem:[%s2] sm:$0x1]
        %v396 = vlaneseq
        %v397 = vshrl.u32 %v396, 7
        %v398 = vsub.s32 0, %v397
        %v399 = vrot.slane %v394, %v398
        %v401 = vadd.f32 %v393, %v399
        %v402 = vpack.c.bf16 %v401, %v401
        %vm403 = vcmask 257024
        %404 = vst.msk [vmem:[#allocation2] sm:$0xf] %vm403, %v402
        %405 = vst.msk [vmem:[#allocation3] sm:$0xff] %vm371, 0.0
      $region52: #{transformer_forward.11} parent=47 // pred_fallthru
        _
      %v406 = vld [vmem:[#allocation2] sm:$0xf]
      %v407 = vld [vmem:[%s348] sm:$0xf]
      %v408 = vld [vmem:[%s348 + $0x4] sm:$0xf]
      %v409 = vld [vmem:[%s348 + $0x8] sm:$0xf]
      %v410 = vld [vmem:[%s348 + $0xc] sm:$0xf]
      %v411 = vld [vmem:[%s351] sm:$0x1]
      %v413 = vlaneseq
      %v414 = vshrl.u32 %v413, 7
      %v415 = vsub.s32 0, %v414
      %v416 = vrot.slane %v411, %v415
      %v422 = vunpack.c.l.b16 %v407
      %v423 = vunpack.c.l.b16 %v408
      %v424 = vunpack.c.l.b16 %v409
      %v425 = vunpack.c.l.b16 %v410
      %v426 = vpack.c.b16 %v423, %v422
      %v427 = vpack.c.b16 %v425, %v424
      %vm430 = vcmask 261120
      %v432 = vsel %vm430, %v406, 0
      %434 = vmatprep.subr.bf16.mxu0 0
      %435 = vmatpush1.bf16.msra.mxu0 %v426
      %436 = vmatprep.subr.bf16.mxu0 0
      %437 = vmatpush1.bf16.msra.mxu0 %v427
      %438 = vmatprep.subr.bf16.mxu0 0
      %439 = vmatpush1.bf16.msra.mxu0 0
      %440 = vmatprep.subr.bf16.mxu0 0
      %441 = vmatpush1.bf16.msra.mxu0 0
      %442 = vmatprep.subr.bf16.mxu0 0
      %443 = vmatpush1.bf16.msra.mxu0 0
      %444 = vmatprep.subr.bf16.mxu0 0
      %445 = vmatpush1.bf16.msra.mxu0 0
      %446 = vmatprep.subr.bf16.mxu0 0
      %447 = vmatpush1.bf16.msra.mxu0 0
      %448 = vmatprep.subr.bf16.mxu0 0
      %449 = vmatpush1.bf16.msra.mxu0 0
      %450 = vmatprep.subr.bf16.mxu0 0
      %451 = vmatpush1.bf16.msra.mxu0 0
      %452 = vmatprep.subr.bf16.mxu0 0
      %453 = vmatpush1.bf16.msra.mxu0 0
      %454 = vmatprep.subr.bf16.mxu0 0
      %455 = vmatpush1.bf16.msra.mxu0 0
      %456 = vmatprep.subr.bf16.mxu0 0
      %457 = vmatpush1.bf16.msra.mxu0 0
      %458 = vmatprep.subr.bf16.mxu0 0
      %459 = vmatpush1.bf16.msra.mxu0 0
      %460 = vmatprep.subr.bf16.mxu0 0
      %461 = vmatpush1.bf16.msra.mxu0 0
      %462 = vmatprep.subr.bf16.mxu0 0
      %463 = vmatpush1.bf16.msra.mxu0 0
      %464 = vmatprep.subr.bf16.mxu0 0
      %465 = vmatpush1.bf16.msra.mxu0 0
      %466 = vmatprep.mubr.bf16.mxu0 0
      %467 = vmatmul.mubr.bf16.gmra.mrb[0].mxu0 %v432
      %v468 = vpop.f32.mrb[0].mxu0
      %v469 = vadd.f32 %v416, %v468
      %v470 = vpop.f32.mrb[0].mxu0
      %v471 = vpop.f32.mrb[0].mxu0
      %v472 = vpop.f32.mrb[0].mxu0
      %473 = vdwg.mxu0
      %v474 = vmul.f32 %v469, 1.702
      %v475 = vxor.u32 %v474, 2147483648
      %v476 = vmul.f32 %v475, 1.442695
      %v477 = vpow.pop %v476
      %v478 = vadd.f32 %v477, 1.0
      %v479 = vrcp.pop %v478
      %v480 = vmul.f32 1.0, %v479
      %v481 = vmul.f32 %v469, %v480
      %v482 = vld [vmem:[#allocation3] sm:$0xff]
      %v483 = vpack.c.bf16 %v481, %v481
      %v484 = vld [vmem:[%s356] sm:$0xf]
      %v485 = vld [vmem:[%s356 + $0x4] sm:$0xf]
      %v486 = vld [vmem:[%s356 + $0x8] sm:$0xf]
      %v487 = vld [vmem:[%s356 + $0xc] sm:$0xf]
      %v488 = vld [vmem:[%s356 + $0x10] sm:$0xf]
      %v489 = vld [vmem:[%s356 + $0x14] sm:$0xf]
      %v490 = vld [vmem:[%s356 + $0x18] sm:$0xf]
      %v491 = vld [vmem:[%s356 + $0x1c] sm:$0xf]
      %v492 = vld [vmem:[%s356 + $0x20] sm:$0xf]
      %v493 = vld [vmem:[%s356 + $0x24] sm:$0xf]
      %v494 = vld [vmem:[%s356 + $0x28] sm:$0xf]
      %v495 = vld [vmem:[%s356 + $0x2c] sm:$0xf]
      %v496 = vld [vmem:[%s356 + $0x30] sm:$0xf]
      %v497 = vld [vmem:[%s356 + $0x34] sm:$0xf]
      %v498 = vld [vmem:[%s356 + $0x38] sm:$0xf]
      %v499 = vld [vmem:[%s356 + $0x3c] sm:$0xf]
      %v516 = vunpack.c.l.b16 %v484
      %v517 = vunpack.c.l.b16 %v485
      %v518 = vunpack.c.l.b16 %v486
      %v519 = vunpack.c.l.b16 %v487
      %v520 = vunpack.c.l.b16 %v488
      %v521 = vunpack.c.l.b16 %v489
      %v522 = vunpack.c.l.b16 %v490
      %v523 = vunpack.c.l.b16 %v491
      %v524 = vunpack.c.l.b16 %v492
      %v525 = vunpack.c.l.b16 %v493
      %v526 = vunpack.c.l.b16 %v494
      %v527 = vunpack.c.l.b16 %v495
      %v528 = vunpack.c.l.b16 %v496
      %v529 = vunpack.c.l.b16 %v497
      %v530 = vunpack.c.l.b16 %v498
      %v531 = vunpack.c.l.b16 %v499
      %v532 = vpack.c.b16 %v517, %v516
      %v533 = vpack.c.b16 %v519, %v518
      %v534 = vpack.c.b16 %v521, %v520
      %v535 = vpack.c.b16 %v523, %v522
      %v536 = vpack.c.b16 %v525, %v524
      %v537 = vpack.c.b16 %v527, %v526
      %v538 = vpack.c.b16 %v529, %v528
      %v539 = vpack.c.b16 %v531, %v530
      %548 = vmatprep.subr.bf16.mxu0 0
      %549 = vmatpush1.bf16.msra.mxu0 %v532
      %550 = vmatprep.subr.bf16.mxu0 0
      %551 = vmatpush1.bf16.msra.mxu0 %v533
      %552 = vmatprep.subr.bf16.mxu0 0
      %553 = vmatpush1.bf16.msra.mxu0 %v534
      %554 = vmatprep.subr.bf16.mxu0 0
      %555 = vmatpush1.bf16.msra.mxu0 %v535
      %556 = vmatprep.subr.bf16.mxu0 0
      %557 = vmatpush1.bf16.msra.mxu0 %v536
      %558 = vmatprep.subr.bf16.mxu0 0
      %559 = vmatpush1.bf16.msra.mxu0 %v537
      %560 = vmatprep.subr.bf16.mxu0 0
      %561 = vmatpush1.bf16.msra.mxu0 %v538
      %562 = vmatprep.subr.bf16.mxu0 0
      %563 = vmatpush1.bf16.msra.mxu0 %v539
      %564 = vmatprep.subr.bf16.mxu0 0
      %565 = vmatpush1.bf16.msra.mxu0 0
      %566 = vmatprep.subr.bf16.mxu0 0
      %567 = vmatpush1.bf16.msra.mxu0 0
      %568 = vmatprep.subr.bf16.mxu0 0
      %569 = vmatpush1.bf16.msra.mxu0 0
      %570 = vmatprep.subr.bf16.mxu0 0
      %571 = vmatpush1.bf16.msra.mxu0 0
      %572 = vmatprep.subr.bf16.mxu0 0
      %573 = vmatpush1.bf16.msra.mxu0 0
      %574 = vmatprep.subr.bf16.mxu0 0
      %575 = vmatpush1.bf16.msra.mxu0 0
      %576 = vmatprep.subr.bf16.mxu0 0
      %577 = vmatpush1.bf16.msra.mxu0 0
      %578 = vmatprep.subr.bf16.mxu0 0
      %579 = vmatpush1.bf16.msra.mxu0 0
      %580 = vmatprep.mubr.bf16.mxu0 0
      %581 = vmatmul.mubr.bf16.gmra.mrb[0].mxu0 %v483
      %v582 = vpop.f32.mrb[0].mxu0
      %v583 = vadd.f32 0.0, %v582
      %v584 = vpop.f32.mrb[0].mxu0
      %v585 = vpop.f32.mrb[0].mxu0
      %v586 = vpop.f32.mrb[0].mxu0
      %587 = vdwg.mxu0
      %v588 = vadd.f32 %v482, %v583
      %589 = vst.msk [vmem:[#allocation3] sm:$0xff] %vm430, %v588
      // Predicated region
      $region53: #{transformer_forward.11} parent=47 // pred_check
        %p590 = pneg %p366
      $region54: #{transformer_forward.11} parent=47 // pred_check_branch
        %592 = sbr.rel (%p590) target = $region56
      $region55: #{transformer_forward.11} parent=47 // pred_region
        %v593 = vld [vmem:[#allocation3] sm:$0xff]
        %v594 = vld [vmem:[%s6] sm:$0x1]
        %v596 = vlaneseq
        %v597 = vshrl.u32 %v596, 7
        %v598 = vsub.s32 0, %v597
        %v599 = vrot.slane %v594, %v598
        %v601 = vadd.f32 %v593, %v599
        %v602 = vld [vmem:[%s344] sm:$0xff]
        %v603 = vadd.f32 %v601, %v602
        %604 = vst.msk [vmem:[%s364] sm:$0xff] %vm430, %v603
      $region56: #{transformer_forward.11} parent=47 // pred_fallthru
        _
      %p605 = scmp.lt.s32.totalorder %s23, 1
      %s606 = scalar_select %p605, %s23, 1
      %p607 = scmp.lt.s32.totalorder %s24, 0
      %s608 = scalar_select %p607, %s24, 0
      %s609 = sadd.s32 %s608, %s606
      %s610 = smul.addr %s609, 8
      %s611 = scalar_lea.vmem %s7, %s610
      // Predicated region
      $region57: #{transformer_forward.11} parent=47 // pred_check
        %p612 = pneg %p226
      $region58: #{transformer_forward.11} parent=47 // pred_check_branch
        %614 = sbr.rel (%p612) target = $region60
      $region59: #{transformer_forward.11} parent=47 // pred_region
        _
      $region60: #{transformer_forward.11} parent=47 // pred_fallthru
        _
    $region48: #{transformer_forward.11} parent=5 // pred_fallthru
      _
    %p615 = scmp.le.s32.totalorder 2, %s13
    // Predicated region
    $region61: #{transformer_forward.11} parent=5 // pred_check
      %p616 = pneg %p615
    $region62: #{transformer_forward.11} parent=5 // pred_check_branch
      %618 = sbr.rel (%p616) target = $region64
    $region63: #{transformer_forward.11} parent=5 // pred_region
      %s619 = ssub.s32 %s13, 2
      // Predicated region
      $region65: #{transformer_forward.11} parent=63 // pred_check
        %p620 = pneg %p232
      $region66: #{transformer_forward.11} parent=63 // pred_check_branch
        %622 = sbr.rel (%p620) target = $region68
      $region67: #{transformer_forward.11} parent=63 // pred_region
        %p623 = scmp.lt.s32.totalorder %s26, 1
        %s624 = scalar_select %p623, %s26, 1
        %p625 = scmp.lt.s32.totalorder %s27, 0
        %s626 = scalar_select %p625, %s27, 0
        %s627 = sadd.s32 %s626, %s624
        %s628 = smul.addr %s627, 8
        %s629 = scalar_lea.vmem %s7, %s628
      $region68: #{transformer_forward.11} parent=63 // pred_fallthru
        _
    $region64: #{transformer_forward.11} parent=5 // pred_fallthru
      _
  $region6: #{transformer_forward.11} parent=0 // loop_footer
    %s17 = sadd.s32 1, %s13
  $region7: #{transformer_forward.11} parent=0 // loop_footer_branch
    %12 = sbr.rel target = $region3
  $region8: #{transformer_forward.11} parent=0 // loop_exit
    _

</llo_original>
